<compile_context>
chip_gen: v7x
topology: tpu7x:2x2x1
jax: 0.10.0
libtpu: 0.0.40
codegen_flags: <defaults>
</compile_context>

<pallas_src>
import math
from functools import partial

import jax
import jax.numpy as jnp
from jax.experimental import pallas as pl
from jax.experimental.pallas import tpu as pltpu


def _round_up(v, m):
    return ((v + m - 1) // m) * m


def _chip_config():
    """VMEM budget + GEMM tile sizes chosen from the local TPU generation."""
    cap = None
    try:
        info = pltpu.get_tpu_info()
        for name in ("vmem_capacity_bytes", "vmem_bytes", "vmem_capacity"):
            cap = getattr(info, name, None)
            if cap:
                break
    except Exception:
        cap = None
    if cap and cap >= 100 * 1024 * 1024:
        # v5e / v6e: 128 MiB physical VMEM -> large tiles, generous scoped limit.
        return dict(vmem_limit=96 * 1024 * 1024, tm=512, tn=512, tk=1024)
    # v7x (64 MiB physical) or unknown: stay conservative.
    return dict(vmem_limit=48 * 1024 * 1024, tm=256, tn=256, tk=512)


_CHIP = _chip_config()


# ------------------------- fused tiled GEMM kernel --------------------------

def _fused_linear_kernel(x_ref, w_ref, b_ref, *rest,
                         activation, fuse_add_ln, eps):
    if fuse_add_ln:
        r_ref, g_ref, be_ref, o_ref, acc_ref = rest
    else:
        o_ref, acc_ref = rest

    k = pl.program_id(2)

    @pl.when(k == 0)
    def _():
        # Fold the bias add into the accumulator init.
        acc_ref[...] = jnp.broadcast_to(
            b_ref[...].astype(jnp.float32), acc_ref.shape)

    # x and w arrive as bf16 blocks; accumulate in f32 on the MXU.
    acc_ref[...] += jnp.dot(x_ref[...], w_ref[...],
                            preferred_element_type=jnp.float32)

    @pl.when(k == pl.num_programs(2) - 1)
    def _():
        y = acc_ref[...]
        if activation == "relu":
            y = jnp.maximum(y, 0.0)
        if fuse_add_ln:
            # LayerNorm(residual + y) over the full feature row (f32 stats).
            y = y + r_ref[...].astype(jnp.float32)
            mean = jnp.mean(y, axis=-1, keepdims=True)
            var = jnp.mean(jnp.square(y - mean), axis=-1, keepdims=True)
            y = (y - mean) * jax.lax.rsqrt(var + eps)
            y = y * g_ref[...].astype(jnp.float32) + be_ref[...].astype(jnp.float32)
        o_ref[...] = y.astype(o_ref.dtype)


def fused_linear(x, w, b, *, residual=None, ln_gamma=None, ln_beta=None,
                 activation=None, eps=1e-5, out_dtype=jnp.bfloat16):
    """y = x @ w + b, optional relu, optional fused (residual add + LayerNorm).

    x: [M, K] (cast to bf16), w: [K, N] bf16, b: [1, N] f32.
    Output dtype is `out_dtype` (bf16 for inter-layer activations)."""
    M, K = x.shape
    N = w.shape[1]
    fuse_add_ln = residual is not None

    x = x.astype(jnp.bfloat16)
    w = w.astype(jnp.bfloat16)

    tm, tn, tk = _CHIP["tm"], _CHIP["tn"], _CHIP["tk"]
    vmem_limit = _CHIP["vmem_limit"]

    # Block sizes: a tile when the dim exceeds it, otherwise the full dim
    # (full-extent blocks are always layout-legal).  Dims exceeding a tile are
    # padded to the tile multiple below — never fall back to a huge full-extent
    # block for an indivisible dim (VMEM blow-up hazard at realistic vocabs).
    bm = tm if M > tm else M
    bk = tk if K > tk else K
    bn = N if fuse_add_ln else (tn if N > tn else N)  # LN needs the whole row

    if fuse_add_ln:
        # Back off bm so the fused-LN epilogue footprint (f32 accumulator +
        # double-buffered residual/output blocks over the full feature row)
        # fits the VMEM budget (matters on v7x: 64 MiB physical).
        def footprint(bm_):
            return (bm_ * bn * 4 + 2 * bm_ * bk * 2 + 2 * bk * bn * 2
                    + 2 * bm_ * bn * 2 + 2 * bm_ * bn * 2)
        while bm in (512, 256) and footprint(bm) > vmem_limit // 2:
            bm //= 2

    Mp, Kp, Np = _round_up(M, bm), _round_up(K, bk), _round_up(N, bn)
    if (Mp, Kp) != (M, K):
        x = jnp.pad(x, ((0, Mp - M), (0, Kp - K)))
    if (Kp, Np) != (K, N):
        w = jnp.pad(w, ((0, Kp - K), (0, Np - N)))
    if Np != N:
        b = jnp.pad(b, ((0, 0), (0, Np - N)))
    if fuse_add_ln and Mp != M:
        residual = jnp.pad(residual, ((0, Mp - M), (0, 0)))

    grid = (Mp // bm, Np // bn, Kp // bk)

    in_specs = [
        pl.BlockSpec((bm, bk), lambda i, j, k: (i, k)),
        pl.BlockSpec((bk, bn), lambda i, j, k: (k, j)),
        pl.BlockSpec((1, bn), lambda i, j, k: (0, j)),
    ]
    args = [x, w, b]
    if fuse_add_ln:
        in_specs += [
            pl.BlockSpec((bm, bn), lambda i, j, k: (i, j)),
            pl.BlockSpec((1, bn), lambda i, j, k: (0, j)),
            pl.BlockSpec((1, bn), lambda i, j, k: (0, j)),
        ]
        args += [residual.astype(jnp.bfloat16), ln_gamma, ln_beta]

    # TODO(synk): if xprof shows exposed DMA on the K loop at these tile sizes,
    # add pipeline_mode=pl.Buffered(3) on the x / w specs (check v7x budget).
    out = pl.pallas_call(
        partial(_fused_linear_kernel, activation=activation,
                fuse_add_ln=fuse_add_ln, eps=eps),
        out_shape=jax.ShapeDtypeStruct((Mp, Np), out_dtype),
        grid=grid,
        in_specs=in_specs,
        out_specs=pl.BlockSpec((bm, bn), lambda i, j, k: (i, j)),
        scratch_shapes=[pltpu.VMEM((bm, bn), jnp.float32)],
        compiler_params=pltpu.CompilerParams(
            dimension_semantics=("parallel", "parallel", "arbitrary"),
            vmem_limit_bytes=vmem_limit),
    )(*args)

    if (Mp, Np) != (M, N):
        out = out[:M, :N]
    return out


# ------------------------------ attention kernel ----------------------------

def _mha_kernel(qkv_ref, *rest, nhead, d_model, scale, has_mask):
    if has_mask:
        mask_ref, o_ref = rest
    else:
        (o_ref,) = rest
    hd = d_model // nhead

    if has_mask:
        mask = mask_ref[...].astype(jnp.float32)

    # TODO(synk): convert to a flash-style online-softmax kernel tiled over KV
    # (grid over (B, nhead, q-tile)) for long sequences; the full [S, S] score
    # block per head is fine for short S and keeps head re-packing in VMEM.
    outs = []
    for h in range(nhead):
        q = qkv_ref[:, h * hd:(h + 1) * hd]                              # bf16
        k = qkv_ref[:, d_model + h * hd:d_model + (h + 1) * hd]
        v = qkv_ref[:, 2 * d_model + h * hd:2 * d_model + (h + 1) * hd]

        s = jnp.einsum('qd,kd->qk', q, k,
                       preferred_element_type=jnp.float32) * scale
        if has_mask:
            s = s + mask
        else:
            # Causal mask generated in-kernel from iota (no O(S^2) HBM operand).
            row = jax.lax.broadcasted_iota(jnp.int32, s.shape, 0)
            col = jax.lax.broadcasted_iota(jnp.int32, s.shape, 1)
            s = jnp.where(row >= col, s, -1e9)

        m = jnp.max(s, axis=-1, keepdims=True)
        p = jnp.exp(s - m)
        p = p * pl.reciprocal(jnp.sum(p, axis=-1, keepdims=True), approx=True)

        outs.append(jnp.dot(p.astype(jnp.bfloat16), v,
                            preferred_element_type=jnp.float32))

    # Single lane-dense [S, d_model] bf16 store (heads re-packed in VMEM).
    o_ref[...] = jnp.concatenate(outs, axis=-1).astype(o_ref.dtype)


def multihead_attention(qkv, mask, *, B, S, d_model, nhead):
    """qkv: [B*S, 3*d_model] bf16 (rows batch-major); mask: [S, S] additive
    float or None (=> in-kernel causal).  Returns [B*S, d_model] bf16."""
    scale = 1.0 / math.sqrt(d_model // nhead)
    in_specs = [pl.BlockSpec((S, 3 * d_model), lambda b: (b, 0))]
    args = [qkv]
    if mask is not None:
        in_specs.append(pl.BlockSpec((S, S), lambda b: (0, 0)))
        args.append(mask)

    # TODO(synk): on v7x with batch < 2, also grid over nhead (needs dynamic
    # per-head lane slicing or a per-head-grouped QKV column layout) so both
    # TensorCores stay busy.
    return pl.pallas_call(
        partial(_mha_kernel, nhead=nhead, d_model=d_model, scale=scale,
                has_mask=mask is not None),
        out_shape=jax.ShapeDtypeStruct((B * S, d_model), jnp.bfloat16),
        grid=(B,),
        in_specs=in_specs,
        out_specs=pl.BlockSpec((S, d_model), lambda b: (b, 0)),
        compiler_params=pltpu.CompilerParams(
            dimension_semantics=("parallel",),
            vmem_limit_bytes=_CHIP["vmem_limit"]),
    )(*args)


# ----------------------------- model (glue) ---------------------------------

def build_positional_encoding(max_len, d_model):
    # Mirrors PositionalEncoding.__init__ buffer construction; returns [L, D].
    position = jnp.arange(max_len, dtype=jnp.float32)[:, None]
    div_term = jnp.exp(jnp.arange(0, d_model, 2, dtype=jnp.float32)
                       * (-math.log(10000.0) / d_model))
    pe = jnp.zeros((max_len, d_model), dtype=jnp.float32)
    pe = pe.at[:, 0::2].set(jnp.sin(position * div_term))
    pe = pe.at[:, 1::2].set(jnp.cos(position * div_term))
    return pe


def init_params(key, ntoken, d_model, nhead, d_hid, nlayers, max_len=512):
    initrange = 0.1
    keys = jax.random.split(key, 2 + nlayers)

    def u(k, shape, scale, dtype=jnp.float32):
        return jax.random.uniform(k, shape, jnp.float32, -scale, scale).astype(dtype)

    # Decoder weight/bias pre-padded ONCE to a multiple of 512 columns so the
    # vocab GEMM always tiles lane-dense and never pads the big weight per call.
    ntoken_pad = _round_up(ntoken, 512)
    dec_w = jnp.zeros((d_model, ntoken_pad), jnp.float32)
    dec_w = dec_w.at[:, :ntoken].set(
        jax.random.uniform(keys[1], (d_model, ntoken), jnp.float32,
                           -initrange, initrange))

    params = {
        "emb": u(keys[0], (ntoken, d_model), initrange),
        "pe": build_positional_encoding(max_len, d_model),
        "dec_w": dec_w.astype(jnp.bfloat16),        # [d_model, ntoken_pad]
        "dec_b": jnp.zeros((1, ntoken_pad), jnp.float32),
        "layers": [],
    }
    for l in range(nlayers):
        lk = jax.random.split(keys[2 + l], 6)
        s_attn = 1.0 / math.sqrt(d_model)
        s_ffn = 1.0 / math.sqrt(d_hid)
        params["layers"].append({
            "in_w": u(lk[0], (d_model, 3 * d_model), s_attn, jnp.bfloat16),
            "in_b": jnp.zeros((1, 3 * d_model), jnp.float32),
            "out_w": u(lk[1], (d_model, d_model), s_attn, jnp.bfloat16),
            "out_b": jnp.zeros((1, d_model), jnp.float32),
            "l1_w": u(lk[2], (d_model, d_hid), s_attn, jnp.bfloat16),
            "l1_b": u(lk[3], (1, d_hid), s_attn),
            "l2_w": u(lk[4], (d_hid, d_model), s_ffn, jnp.bfloat16),
            "l2_b": u(lk[5], (1, d_model), s_ffn),
            "ln1_g": jnp.ones((1, d_model), jnp.float32),
            "ln1_b": jnp.zeros((1, d_model), jnp.float32),
            "ln2_g": jnp.ones((1, d_model), jnp.float32),
            "ln2_b": jnp.zeros((1, d_model), jnp.float32),
        })
    return params


def encoder_layer_forward(x2, src_mask, p, S, B, d_model, nhead):
    """Post-norm TransformerEncoderLayer (relu FFN), dropout = identity.
       x2: [B*S, d_model] bf16 with rows ordered (batch, seq)."""
    # QKV projection -> packed [B*S, 3*d_model] slab consumed directly by the
    # attention kernel (no XLA head split/merge relayouts through HBM).
    qkv = fused_linear(x2, p["in_w"], p["in_b"])
    attn = multihead_attention(qkv, src_mask, B=B, S=S,
                               d_model=d_model, nhead=nhead)     # [B*S, D] bf16

    # out_proj + residual + LayerNorm1, fused in one kernel.
    x2 = fused_linear(attn, p["out_w"], p["out_b"],
                      residual=x2, ln_gamma=p["ln1_g"], ln_beta=p["ln1_b"])

    # FFN: l1 + relu, then l2 + residual + LayerNorm2, each a single kernel.
    ff = fused_linear(x2, p["l1_w"], p["l1_b"], activation="relu")
    x2 = fused_linear(ff, p["l2_w"], p["l2_b"],
                      residual=x2, ln_gamma=p["ln2_g"], ln_beta=p["ln2_b"])
    return x2


def transformer_model_forward(src, src_mask, params, *, d_model, nhead, ntoken):
    """src: [S, B] int32 tokens; src_mask: [S, S] additive float mask (or None
       for an in-kernel causal mask).  Returns: [S, B, ntoken] float32."""
    S, B = src.shape

    # Embedding gather + sqrt(d_model) scale + positional encoding: trivially
    # fused elementwise by XLA (dropout = identity).  Activations are carried
    # as bf16 from here on (f32 accumulators / statistics inside the kernels).
    x = params["emb"][src.T] * math.sqrt(d_model) + params["pe"][None, :S, :]
    x2 = x.astype(jnp.bfloat16).reshape(B * S, d_model)     # batch-major rows

    for p in params["layers"]:
        x2 = encoder_layer_forward(x2, src_mask, p, S, B, d_model, nhead)

    # Switch to (seq, batch) row order on the SMALL [., d_model] activation so
    # the large [S, B, ntoken] logits come out directly in output order and
    # never take an HBM transpose.
    x_sb = x2.reshape(B, S, d_model).transpose(1, 0, 2).reshape(S * B, d_model)
    logits = fused_linear(x_sb, params["dec_w"], params["dec_b"],
                          out_dtype=jnp.float32)             # [S*B, ntoken_pad]
    return logits[:, :ntoken].reshape(S, B, ntoken)


# ---------------------------------- main ------------------------------------

if __name__ == "__main__":
    # Small, forward-consistent shapes.
    ntoken, d_model, nhead, d_hid, nlayers = 50, 32, 4, 64, 2
    seq_len, batch = 8, 2

    key = jax.random.PRNGKey(0)
    k_param, k_src = jax.random.split(key)

    params = init_params(k_param, ntoken, d_model, nhead, d_hid, nlayers,
                         max_len=64)

    src = jax.random.randint(k_src, (seq_len, batch), 0, ntoken, dtype=jnp.int32)
    # Causal additive mask (as produced by generate_square_subsequent_mask).
    src_mask = jnp.where(
        jnp.arange(seq_len)[:, None] >= jnp.arange(seq_len)[None, :],
        0.0, -1e9).astype(jnp.float32)

    fwd = jax.jit(partial(transformer_model_forward,
                          d_model=d_model, nhead=nhead, ntoken=ntoken))
    out = fwd(src, src_mask, params)
    out = jax.block_until_ready(out)

    assert out.shape == (seq_len, batch, ntoken), out.shape
    assert jnp.all(jnp.isfinite(out)), "non-finite output"
    # TODO(synk): dropout layers are identity (eval mode); no RNG dropout kernel emitted.
    print("KERNEL_OK")
</pallas_src>

<mosaic_0001>
module attributes {stable_mosaic.version = 11 : i64} {
  func.func @_fused_linear_kernel(%arg0: i32, %arg1: i32, %arg2: i32, %arg3: memref<16x32xbf16, #tpu.memory_space<vmem>>, %arg4: memref<32x32xbf16, #tpu.memory_space<vmem>>, %arg5: memref<1x32xf32, #tpu.memory_space<vmem>>, %arg6: memref<16x32xbf16, #tpu.memory_space<vmem>>, %arg7: memref<1x32xf32, #tpu.memory_space<vmem>>, %arg8: memref<1x32xf32, #tpu.memory_space<vmem>>, %arg9: memref<16x32xbf16, #tpu.memory_space<vmem>>, %arg10: memref<16x32xf32, #tpu.memory_space<vmem>>) attributes {dimension_semantics = [#tpu.dimension_semantics<parallel>, #tpu.dimension_semantics<parallel>, #tpu.dimension_semantics<arbitrary>], iteration_bounds = array<i64: 1, 1, 1>, scalar_prefetch = 0 : i64, scratch_operands = 1 : i64, tpu.core_type = #tpu.core_type<tc>, window_params = [{transform_indices = @transform_0, window_bounds = array<i64: 16, 32>}, {transform_indices = @transform_1, window_bounds = array<i64: 32, 32>}, {transform_indices = @transform_2, window_bounds = array<i64: 1, 32>}, {transform_indices = @transform_3, window_bounds = array<i64: 16, 32>}, {transform_indices = @transform_4, window_bounds = array<i64: 1, 32>}, {transform_indices = @transform_5, window_bounds = array<i64: 1, 32>}, {transform_indices = @transform_6, window_bounds = array<i64: 16, 32>}]} {
    %c0_i32 = arith.constant 0 : i32
    %0 = arith.cmpi eq, %arg2, %c0_i32 : i32
    %1 = arith.extui %0 : i1 to i32
    %c0_i32_0 = arith.constant 0 : i32
    %2 = arith.cmpi ne, %1, %c0_i32_0 : i32
    scf.if %2 {
      %c0_10 = arith.constant 0 : index
      %c0_11 = arith.constant 0 : index
      %12 = vector.load %arg5[%c0_10, %c0_11] : memref<1x32xf32, #tpu.memory_space<vmem>>, vector<1x32xf32>
      %13 = vector.shape_cast %12 : vector<1x32xf32> to vector<1x32xf32>
      %14 = vector.broadcast %13 : vector<1x32xf32> to vector<16x32xf32>
      %c0_12 = arith.constant 0 : index
      %c0_13 = arith.constant 0 : index
      %15 = vector.load %arg10[%c0_12, %c0_13] : memref<16x32xf32, #tpu.memory_space<vmem>>, vector<16x32xf32>
      tpu.vector_store %arg10[%c0_12, %c0_13], %14 {strides = array<i32>} : memref<16x32xf32, #tpu.memory_space<vmem>>, vector<16x32xf32>,
    } else {
    }
    %c0 = arith.constant 0 : index
    %c0_1 = arith.constant 0 : index
    %3 = vector.load %arg10[%c0, %c0_1] : memref<16x32xf32, #tpu.memory_space<vmem>>, vector<16x32xf32>
    %c0_2 = arith.constant 0 : index
    %c0_3 = arith.constant 0 : index
    %4 = vector.load %arg3[%c0_2, %c0_3] : memref<16x32xbf16, #tpu.memory_space<vmem>>, vector<16x32xbf16>
    %c0_4 = arith.constant 0 : index
    %c0_5 = arith.constant 0 : index
    %5 = vector.load %arg4[%c0_4, %c0_5] : memref<32x32xbf16, #tpu.memory_space<vmem>>, vector<32x32xbf16>
    %cst = arith.constant dense<0.000000e+00> : vector<16x32xf32>
    %6 = tpu.matmul %4, %5, %cst {dimension_numbers = #tpu.dot_dimension_numbers<[1], [0], [0], [1], [0, 0, 1, 1], [], []>} : vector<16x32xbf16>, vector<32x32xbf16>, vector<16x32xf32> -> vector<16x32xf32>
    %7 = arith.addf %3, %6 : vector<16x32xf32>
    %c0_6 = arith.constant 0 : index
    %c0_7 = arith.constant 0 : index
    %8 = vector.load %arg10[%c0_6, %c0_7] : memref<16x32xf32, #tpu.memory_space<vmem>>, vector<16x32xf32>
    tpu.vector_store %arg10[%c0_6, %c0_7], %7 {strides = array<i32>} : memref<16x32xf32, #tpu.memory_space<vmem>>, vector<16x32xf32>,
    %c0_i32_8 = arith.constant 0 : i32
    %9 = arith.cmpi eq, %arg2, %c0_i32_8 : i32
    %10 = arith.extui %9 : i1 to i32
    %c0_i32_9 = arith.constant 0 : i32
    %11 = arith.cmpi ne, %10, %c0_i32_9 : i32
    scf.if %11 {
      %c0_10 = arith.constant 0 : index
      %c0_11 = arith.constant 0 : index
      %12 = vector.load %arg10[%c0_10, %c0_11] : memref<16x32xf32, #tpu.memory_space<vmem>>, vector<16x32xf32>
      %c0_12 = arith.constant 0 : index
      %c0_13 = arith.constant 0 : index
      %13 = vector.load %arg6[%c0_12, %c0_13] : memref<16x32xbf16, #tpu.memory_space<vmem>>, vector<16x32xbf16>
      %14 = arith.extf %13 : vector<16x32xbf16> to vector<16x32xf32>
      %15 = arith.addf %12, %14 : vector<16x32xf32>
      %cst_14 = arith.constant dense<0.000000e+00> : vector<16xf32>
      %16 = vector.multi_reduction <add>, %15, %cst_14 [1] : vector<16x32xf32> to vector<16xf32>
      %17 = vector.shape_cast %16 : vector<16xf32> to vector<16x1xf32>
      %cst_15 = arith.constant 3.200000e+01 : f32
      %18 = vector.broadcast %cst_15 : f32 to vector<16x1xf32>
      %19 = arith.divf %17, %18 : vector<16x1xf32>
      %20 = vector.broadcast %19 : vector<16x1xf32> to vector<16x32xf32>
      %21 = arith.subf %15, %20 : vector<16x32xf32>
      %22 = arith.mulf %21, %21 : vector<16x32xf32>
      %cst_16 = arith.constant dense<0.000000e+00> : vector<16xf32>
      %23 = vector.multi_reduction <add>, %22, %cst_16 [1] : vector<16x32xf32> to vector<16xf32>
      %24 = vector.shape_cast %23 : vector<16xf32> to vector<16x1xf32>
      %cst_17 = arith.constant 3.200000e+01 : f32
      %25 = vector.broadcast %cst_17 : f32 to vector<16x1xf32>
      %26 = arith.divf %24, %25 : vector<16x1xf32>
      %27 = vector.broadcast %19 : vector<16x1xf32> to vector<16x32xf32>
      %28 = arith.subf %15, %27 : vector<16x32xf32>
      %cst_18 = arith.constant 9.99999974E-6 : f32
      %29 = vector.broadcast %cst_18 : f32 to vector<16x1xf32>
      %30 = arith.addf %26, %29 : vector<16x1xf32>
      %31 = math.rsqrt %30 : vector<16x1xf32>
      %32 = vector.broadcast %31 : vector<16x1xf32> to vector<16x32xf32>
      %33 = arith.mulf %28, %32 : vector<16x32xf32>
      %c0_19 = arith.constant 0 : index
      %c0_20 = arith.constant 0 : index
      %34 = vector.load %arg7[%c0_19, %c0_20] : memref<1x32xf32, #tpu.memory_space<vmem>>, vector<1x32xf32>
      %35 = vector.broadcast %34 : vector<1x32xf32> to vector<16x32xf32>
      %36 = arith.mulf %33, %35 : vector<16x32xf32>
      %c0_21 = arith.constant 0 : index
      %c0_22 = arith.constant 0 : index
      %37 = vector.load %arg8[%c0_21, %c0_22] : memref<1x32xf32, #tpu.memory_space<vmem>>, vector<1x32xf32>
      %38 = vector.broadcast %37 : vector<1x32xf32> to vector<16x32xf32>
      %39 = arith.addf %36, %38 : vector<16x32xf32>
      %40 = arith.truncf %39 : vector<16x32xf32> to vector<16x32xbf16>
      %c0_23 = arith.constant 0 : index
      %c0_24 = arith.constant 0 : index
      %41 = vector.load %arg9[%c0_23, %c0_24] : memref<16x32xbf16, #tpu.memory_space<vmem>>, vector<16x32xbf16>
      tpu.vector_store %arg9[%c0_23, %c0_24], %40 {strides = array<i32>} : memref<16x32xbf16, #tpu.memory_space<vmem>>, vector<16x32xbf16>,
    } else {
    }
    return
  }
  func.func @transform_0(%arg0: i32, %arg1: i32, %arg2: i32) -> (i32, i32) {
    %c0_i32 = arith.constant 0 : i32
    return %arg0, %arg2 : i32, i32
  }
  func.func @transform_1(%arg0: i32, %arg1: i32, %arg2: i32) -> (i32, i32) {
    %c0_i32 = arith.constant 0 : i32
    return %arg2, %arg1 : i32, i32
  }
  func.func @transform_2(%arg0: i32, %arg1: i32, %arg2: i32) -> (i32, i32) {
    %c0_i32 = arith.constant 0 : i32
    %c0_i32_0 = arith.constant 0 : i32
    return %c0_i32, %arg1 : i32, i32
  }
  func.func @transform_3(%arg0: i32, %arg1: i32, %arg2: i32) -> (i32, i32) {
    %c0_i32 = arith.constant 0 : i32
    return %arg0, %arg1 : i32, i32
  }
  func.func @transform_4(%arg0: i32, %arg1: i32, %arg2: i32) -> (i32, i32) {
    %c0_i32 = arith.constant 0 : i32
    %c0_i32_0 = arith.constant 0 : i32
    return %c0_i32, %arg1 : i32, i32
  }
  func.func @transform_5(%arg0: i32, %arg1: i32, %arg2: i32) -> (i32, i32) {
    %c0_i32 = arith.constant 0 : i32
    %c0_i32_0 = arith.constant 0 : i32
    return %c0_i32, %arg1 : i32, i32
  }
  func.func @transform_6(%arg0: i32, %arg1: i32, %arg2: i32) -> (i32, i32) {
    %c0_i32 = arith.constant 0 : i32
    return %arg0, %arg1 : i32, i32
  }
}

module attributes {stable_mosaic.version = 11 : i64} {
  func.func @_fused_linear_kernel(%arg0: i32, %arg1: i32, %arg2: i32, %arg3: memref<16x32xbf16, #tpu.memory_space<vmem>>, %arg4: memref<32x96xbf16, #tpu.memory_space<vmem>>, %arg5: memref<1x96xf32, #tpu.memory_space<vmem>>, %arg6: memref<16x96xbf16, #tpu.memory_space<vmem>>, %arg7: memref<16x96xf32, #tpu.memory_space<vmem>>) attributes {dimension_semantics = [#tpu.dimension_semantics<parallel>, #tpu.dimension_semantics<parallel>, #tpu.dimension_semantics<arbitrary>], iteration_bounds = array<i64: 1, 1, 1>, scalar_prefetch = 0 : i64, scratch_operands = 1 : i64, tpu.core_type = #tpu.core_type<tc>, window_params = [{transform_indices = @transform_0, window_bounds = array<i64: 16, 32>}, {transform_indices = @transform_1, window_bounds = array<i64: 32, 96>}, {transform_indices = @transform_2, window_bounds = array<i64: 1, 96>}, {transform_indices = @transform_3, window_bounds = array<i64: 16, 96>}]} {
    %c0_i32 = arith.constant 0 : i32
    %0 = arith.cmpi eq, %arg2, %c0_i32 : i32
    %1 = arith.extui %0 : i1 to i32
    %c0_i32_0 = arith.constant 0 : i32
    %2 = arith.cmpi ne, %1, %c0_i32_0 : i32
    scf.if %2 {
      %c0_10 = arith.constant 0 : index
      %c0_11 = arith.constant 0 : index
      %12 = vector.load %arg5[%c0_10, %c0_11] : memref<1x96xf32, #tpu.memory_space<vmem>>, vector<1x96xf32>
      %13 = vector.shape_cast %12 : vector<1x96xf32> to vector<1x96xf32>
      %14 = vector.broadcast %13 : vector<1x96xf32> to vector<16x96xf32>
      %c0_12 = arith.constant 0 : index
      %c0_13 = arith.constant 0 : index
      %15 = vector.load %arg7[%c0_12, %c0_13] : memref<16x96xf32, #tpu.memory_space<vmem>>, vector<16x96xf32>
      tpu.vector_store %arg7[%c0_12, %c0_13], %14 {strides = array<i32>} : memref<16x96xf32, #tpu.memory_space<vmem>>, vector<16x96xf32>,
    } else {
    }
    %c0 = arith.constant 0 : index
    %c0_1 = arith.constant 0 : index
    %3 = vector.load %arg7[%c0, %c0_1] : memref<16x96xf32, #tpu.memory_space<vmem>>, vector<16x96xf32>
    %c0_2 = arith.constant 0 : index
    %c0_3 = arith.constant 0 : index
    %4 = vector.load %arg3[%c0_2, %c0_3] : memref<16x32xbf16, #tpu.memory_space<vmem>>, vector<16x32xbf16>
    %c0_4 = arith.constant 0 : index
    %c0_5 = arith.constant 0 : index
    %5 = vector.load %arg4[%c0_4, %c0_5] : memref<32x96xbf16, #tpu.memory_space<vmem>>, vector<32x96xbf16>
    %cst = arith.constant dense<0.000000e+00> : vector<16x96xf32>
    %6 = tpu.matmul %4, %5, %cst {dimension_numbers = #tpu.dot_dimension_numbers<[1], [0], [0], [1], [0, 0, 1, 1], [], []>} : vector<16x32xbf16>, vector<32x96xbf16>, vector<16x96xf32> -> vector<16x96xf32>
    %7 = arith.addf %3, %6 : vector<16x96xf32>
    %c0_6 = arith.constant 0 : index
    %c0_7 = arith.constant 0 : index
    %8 = vector.load %arg7[%c0_6, %c0_7] : memref<16x96xf32, #tpu.memory_space<vmem>>, vector<16x96xf32>
    tpu.vector_store %arg7[%c0_6, %c0_7], %7 {strides = array<i32>} : memref<16x96xf32, #tpu.memory_space<vmem>>, vector<16x96xf32>,
    %c0_i32_8 = arith.constant 0 : i32
    %9 = arith.cmpi eq, %arg2, %c0_i32_8 : i32
    %10 = arith.extui %9 : i1 to i32
    %c0_i32_9 = arith.constant 0 : i32
    %11 = arith.cmpi ne, %10, %c0_i32_9 : i32
    scf.if %11 {
      %c0_10 = arith.constant 0 : index
      %c0_11 = arith.constant 0 : index
      %12 = vector.load %arg7[%c0_10, %c0_11] : memref<16x96xf32, #tpu.memory_space<vmem>>, vector<16x96xf32>
      %13 = arith.truncf %12 : vector<16x96xf32> to vector<16x96xbf16>
      %c0_12 = arith.constant 0 : index
      %c0_13 = arith.constant 0 : index
      %14 = vector.load %arg6[%c0_12, %c0_13] : memref<16x96xbf16, #tpu.memory_space<vmem>>, vector<16x96xbf16>
      tpu.vector_store %arg6[%c0_12, %c0_13], %13 {strides = array<i32>} : memref<16x96xbf16, #tpu.memory_space<vmem>>, vector<16x96xbf16>,
    } else {
    }
    return
  }
  func.func @transform_0(%arg0: i32, %arg1: i32, %arg2: i32) -> (i32, i32) {
    %c0_i32 = arith.constant 0 : i32
    return %arg0, %arg2 : i32, i32
  }
  func.func @transform_1(%arg0: i32, %arg1: i32, %arg2: i32) -> (i32, i32) {
    %c0_i32 = arith.constant 0 : i32
    return %arg2, %arg1 : i32, i32
  }
  func.func @transform_2(%arg0: i32, %arg1: i32, %arg2: i32) -> (i32, i32) {
    %c0_i32 = arith.constant 0 : i32
    %c0_i32_0 = arith.constant 0 : i32
    return %c0_i32, %arg1 : i32, i32
  }
  func.func @transform_3(%arg0: i32, %arg1: i32, %arg2: i32) -> (i32, i32) {
    %c0_i32 = arith.constant 0 : i32
    return %arg0, %arg1 : i32, i32
  }
}

module attributes {stable_mosaic.version = 11 : i64} {
  func.func @_mha_kernel(%arg0: i32, %arg1: memref<8x96xbf16, #tpu.memory_space<vmem>>, %arg2: memref<8x8xf32, #tpu.memory_space<vmem>>, %arg3: memref<8x32xbf16, #tpu.memory_space<vmem>>) attributes {dimension_semantics = [#tpu.dimension_semantics<parallel>], iteration_bounds = array<i64: 2>, scalar_prefetch = 0 : i64, scratch_operands = 0 : i64, tpu.core_type = #tpu.core_type<tc>, window_params = [{transform_indices = @transform_0, window_bounds = array<i64: 8, 96>}, {pipeline_mode = #tpu.pipeline_mode<synchronous>, transform_indices = @transform_1, window_bounds = array<i64: 8, 8>}, {transform_indices = @transform_2, window_bounds = array<i64: 8, 32>}]} {
    %c0 = arith.constant 0 : index
    %c0_0 = arith.constant 0 : index
    %0 = vector.load %arg2[%c0, %c0_0] : memref<8x8xf32, #tpu.memory_space<vmem>>, vector<8x8xf32>
    %c0_1 = arith.constant 0 : index
    %c0_2 = arith.constant 0 : index
    %1 = vector.load %arg1[%c0_1, %c0_2] : memref<8x96xbf16, #tpu.memory_space<vmem>>, vector<8x8xbf16>
    %c0_3 = arith.constant 0 : index
    %c32 = arith.constant 32 : index
    %2 = vector.load %arg1[%c0_3, %c32] : memref<8x96xbf16, #tpu.memory_space<vmem>>, vector<8x8xbf16>
    %c0_4 = arith.constant 0 : index
    %c64 = arith.constant 64 : index
    %3 = vector.load %arg1[%c0_4, %c64] : memref<8x96xbf16, #tpu.memory_space<vmem>>, vector<8x8xbf16>
    "tpu.trace_start"() <{level = 10 : i32, message = "qd,kd->qk"}> : () -> ()
    %cst = arith.constant dense<0.000000e+00> : vector<8x8xf32>
    %4 = tpu.matmul %1, %2, %cst {dimension_numbers = #tpu.dot_dimension_numbers<[1], [1], [0], [0], [0, 0, 1, 0], [], []>} : vector<8x8xbf16>, vector<8x8xbf16>, vector<8x8xf32> -> vector<8x8xf32>
    "tpu.trace_stop"() : () -> ()
    %cst_5 = arith.constant 0.353553385 : f32
    %5 = vector.broadcast %cst_5 : f32 to vector<8x8xf32>
    %6 = arith.mulf %4, %5 : vector<8x8xf32>
    %7 = arith.addf %6, %0 : vector<8x8xf32>
    %cst_6 = arith.constant dense<0xFF800000> : vector<8xf32>
    %8 = vector.multi_reduction <maximumf>, %7, %cst_6 [1] : vector<8x8xf32> to vector<8xf32>
    %9 = vector.shape_cast %8 : vector<8xf32> to vector<8x1xf32>
    %10 = vector.broadcast %9 : vector<8x1xf32> to vector<8x8xf32>
    %11 = arith.subf %7, %10 : vector<8x8xf32>
    %12 = math.exp %11 : vector<8x8xf32>
    %cst_7 = arith.constant dense<0.000000e+00> : vector<8xf32>
    %13 = vector.multi_reduction <add>, %12, %cst_7 [1] : vector<8x8xf32> to vector<8xf32>
    %14 = vector.shape_cast %13 : vector<8xf32> to vector<8x1xf32>
    %15 = tpu.reciprocal %14 {approx = true} : vector<8x1xf32> -> vector<8x1xf32>
    %16 = vector.broadcast %15 : vector<8x1xf32> to vector<8x8xf32>
    %17 = arith.mulf %12, %16 : vector<8x8xf32>
    %18 = arith.truncf %17 : vector<8x8xf32> to vector<8x8xbf16>
    %cst_8 = arith.constant dense<0.000000e+00> : vector<8x8xf32>
    %19 = tpu.matmul %18, %3, %cst_8 {dimension_numbers = #tpu.dot_dimension_numbers<[1], [0], [0], [1], [0, 0, 1, 1], [], []>} : vector<8x8xbf16>, vector<8x8xbf16>, vector<8x8xf32> -> vector<8x8xf32>
    %c0_9 = arith.constant 0 : index
    %c8 = arith.constant 8 : index
    %20 = vector.load %arg1[%c0_9, %c8] : memref<8x96xbf16, #tpu.memory_space<vmem>>, vector<8x8xbf16>
    %c0_10 = arith.constant 0 : index
    %c40 = arith.constant 40 : index
    %21 = vector.load %arg1[%c0_10, %c40] : memref<8x96xbf16, #tpu.memory_space<vmem>>, vector<8x8xbf16>
    %c0_11 = arith.constant 0 : index
    %c72 = arith.constant 72 : index
    %22 = vector.load %arg1[%c0_11, %c72] : memref<8x96xbf16, #tpu.memory_space<vmem>>, vector<8x8xbf16>
    "tpu.trace_start"() <{level = 10 : i32, message = "qd,kd->qk"}> : () -> ()
    %cst_12 = arith.constant dense<0.000000e+00> : vector<8x8xf32>
    %23 = tpu.matmul %20, %21, %cst_12 {dimension_numbers = #tpu.dot_dimension_numbers<[1], [1], [0], [0], [0, 0, 1, 0], [], []>} : vector<8x8xbf16>, vector<8x8xbf16>, vector<8x8xf32> -> vector<8x8xf32>
    "tpu.trace_stop"() : () -> ()
    %cst_13 = arith.constant 0.353553385 : f32
    %24 = vector.broadcast %cst_13 : f32 to vector<8x8xf32>
    %25 = arith.mulf %23, %24 : vector<8x8xf32>
    %26 = arith.addf %25, %0 : vector<8x8xf32>
    %cst_14 = arith.constant dense<0xFF800000> : vector<8xf32>
    %27 = vector.multi_reduction <maximumf>, %26, %cst_14 [1] : vector<8x8xf32> to vector<8xf32>
    %28 = vector.shape_cast %27 : vector<8xf32> to vector<8x1xf32>
    %29 = vector.broadcast %28 : vector<8x1xf32> to vector<8x8xf32>
    %30 = arith.subf %26, %29 : vector<8x8xf32>
    %31 = math.exp %30 : vector<8x8xf32>
    %cst_15 = arith.constant dense<0.000000e+00> : vector<8xf32>
    %32 = vector.multi_reduction <add>, %31, %cst_15 [1] : vector<8x8xf32> to vector<8xf32>
    %33 = vector.shape_cast %32 : vector<8xf32> to vector<8x1xf32>
    %34 = tpu.reciprocal %33 {approx = true} : vector<8x1xf32> -> vector<8x1xf32>
    %35 = vector.broadcast %34 : vector<8x1xf32> to vector<8x8xf32>
    %36 = arith.mulf %31, %35 : vector<8x8xf32>
    %37 = arith.truncf %36 : vector<8x8xf32> to vector<8x8xbf16>
    %cst_16 = arith.constant dense<0.000000e+00> : vector<8x8xf32>
    %38 = tpu.matmul %37, %22, %cst_16 {dimension_numbers = #tpu.dot_dimension_numbers<[1], [0], [0], [1], [0, 0, 1, 1], [], []>} : vector<8x8xbf16>, vector<8x8xbf16>, vector<8x8xf32> -> vector<8x8xf32>
    %c0_17 = arith.constant 0 : index
    %c16 = arith.constant 16 : index
    %39 = vector.load %arg1[%c0_17, %c16] : memref<8x96xbf16, #tpu.memory_space<vmem>>, vector<8x8xbf16>
    %c0_18 = arith.constant 0 : index
    %c48 = arith.constant 48 : index
    %40 = vector.load %arg1[%c0_18, %c48] : memref<8x96xbf16, #tpu.memory_space<vmem>>, vector<8x8xbf16>
    %c0_19 = arith.constant 0 : index
    %c80 = arith.constant 80 : index
    %41 = vector.load %arg1[%c0_19, %c80] : memref<8x96xbf16, #tpu.memory_space<vmem>>, vector<8x8xbf16>
    "tpu.trace_start"() <{level = 10 : i32, message = "qd,kd->qk"}> : () -> ()
    %cst_20 = arith.constant dense<0.000000e+00> : vector<8x8xf32>
    %42 = tpu.matmul %39, %40, %cst_20 {dimension_numbers = #tpu.dot_dimension_numbers<[1], [1], [0], [0], [0, 0, 1, 0], [], []>} : vector<8x8xbf16>, vector<8x8xbf16>, vector<8x8xf32> -> vector<8x8xf32>
    "tpu.trace_stop"() : () -> ()
    %cst_21 = arith.constant 0.353553385 : f32
    %43 = vector.broadcast %cst_21 : f32 to vector<8x8xf32>
    %44 = arith.mulf %42, %43 : vector<8x8xf32>
    %45 = arith.addf %44, %0 : vector<8x8xf32>
    %cst_22 = arith.constant dense<0xFF800000> : vector<8xf32>
    %46 = vector.multi_reduction <maximumf>, %45, %cst_22 [1] : vector<8x8xf32> to vector<8xf32>
    %47 = vector.shape_cast %46 : vector<8xf32> to vector<8x1xf32>
    %48 = vector.broadcast %47 : vector<8x1xf32> to vector<8x8xf32>
    %49 = arith.subf %45, %48 : vector<8x8xf32>
    %50 = math.exp %49 : vector<8x8xf32>
    %cst_23 = arith.constant dense<0.000000e+00> : vector<8xf32>
    %51 = vector.multi_reduction <add>, %50, %cst_23 [1] : vector<8x8xf32> to vector<8xf32>
    %52 = vector.shape_cast %51 : vector<8xf32> to vector<8x1xf32>
    %53 = tpu.reciprocal %52 {approx = true} : vector<8x1xf32> -> vector<8x1xf32>
    %54 = vector.broadcast %53 : vector<8x1xf32> to vector<8x8xf32>
    %55 = arith.mulf %50, %54 : vector<8x8xf32>
    %56 = arith.truncf %55 : vector<8x8xf32> to vector<8x8xbf16>
    %cst_24 = arith.constant dense<0.000000e+00> : vector<8x8xf32>
    %57 = tpu.matmul %56, %41, %cst_24 {dimension_numbers = #tpu.dot_dimension_numbers<[1], [0], [0], [1], [0, 0, 1, 1], [], []>} : vector<8x8xbf16>, vector<8x8xbf16>, vector<8x8xf32> -> vector<8x8xf32>
    %c0_25 = arith.constant 0 : index
    %c24 = arith.constant 24 : index
    %58 = vector.load %arg1[%c0_25, %c24] : memref<8x96xbf16, #tpu.memory_space<vmem>>, vector<8x8xbf16>
    %c0_26 = arith.constant 0 : index
    %c56 = arith.constant 56 : index
    %59 = vector.load %arg1[%c0_26, %c56] : memref<8x96xbf16, #tpu.memory_space<vmem>>, vector<8x8xbf16>
    %c0_27 = arith.constant 0 : index
    %c88 = arith.constant 88 : index
    %60 = vector.load %arg1[%c0_27, %c88] : memref<8x96xbf16, #tpu.memory_space<vmem>>, vector<8x8xbf16>
    "tpu.trace_start"() <{level = 10 : i32, message = "qd,kd->qk"}> : () -> ()
    %cst_28 = arith.constant dense<0.000000e+00> : vector<8x8xf32>
    %61 = tpu.matmul %58, %59, %cst_28 {dimension_numbers = #tpu.dot_dimension_numbers<[1], [1], [0], [0], [0, 0, 1, 0], [], []>} : vector<8x8xbf16>, vector<8x8xbf16>, vector<8x8xf32> -> vector<8x8xf32>
    "tpu.trace_stop"() : () -> ()
    %cst_29 = arith.constant 0.353553385 : f32
    %62 = vector.broadcast %cst_29 : f32 to vector<8x8xf32>
    %63 = arith.mulf %61, %62 : vector<8x8xf32>
    %64 = arith.addf %63, %0 : vector<8x8xf32>
    %cst_30 = arith.constant dense<0xFF800000> : vector<8xf32>
    %65 = vector.multi_reduction <maximumf>, %64, %cst_30 [1] : vector<8x8xf32> to vector<8xf32>
    %66 = vector.shape_cast %65 : vector<8xf32> to vector<8x1xf32>
    %67 = vector.broadcast %66 : vector<8x1xf32> to vector<8x8xf32>
    %68 = arith.subf %64, %67 : vector<8x8xf32>
    %69 = math.exp %68 : vector<8x8xf32>
    %cst_31 = arith.constant dense<0.000000e+00> : vector<8xf32>
    %70 = vector.multi_reduction <add>, %69, %cst_31 [1] : vector<8x8xf32> to vector<8xf32>
    %71 = vector.shape_cast %70 : vector<8xf32> to vector<8x1xf32>
    %72 = tpu.reciprocal %71 {approx = true} : vector<8x1xf32> -> vector<8x1xf32>
    %73 = vector.broadcast %72 : vector<8x1xf32> to vector<8x8xf32>
    %74 = arith.mulf %69, %73 : vector<8x8xf32>
    %75 = arith.truncf %74 : vector<8x8xf32> to vector<8x8xbf16>
    %cst_32 = arith.constant dense<0.000000e+00> : vector<8x8xf32>
    %76 = tpu.matmul %75, %60, %cst_32 {dimension_numbers = #tpu.dot_dimension_numbers<[1], [0], [0], [1], [0, 0, 1, 1], [], []>} : vector<8x8xbf16>, vector<8x8xbf16>, vector<8x8xf32> -> vector<8x8xf32>
    %77 = tpu.concatenate %19, %38, %57, %76 in 1 : vector<8x8xf32>, vector<8x8xf32>, vector<8x8xf32>, vector<8x8xf32> -> vector<8x32xf32>
    %78 = arith.truncf %77 : vector<8x32xf32> to vector<8x32xbf16>
    %c0_33 = arith.constant 0 : index
    %c0_34 = arith.constant 0 : index
    %79 = vector.load %arg3[%c0_33, %c0_34] : memref<8x32xbf16, #tpu.memory_space<vmem>>, vector<8x32xbf16>
    tpu.vector_store %arg3[%c0_33, %c0_34], %78 {strides = array<i32>} : memref<8x32xbf16, #tpu.memory_space<vmem>>, vector<8x32xbf16>,
    return
  }
  func.func @transform_0(%arg0: i32) -> (i32, i32) {
    %c0_i32 = arith.constant 0 : i32
    %c0_i32_0 = arith.constant 0 : i32
    return %arg0, %c0_i32 : i32, i32
  }
  func.func @transform_1(%arg0: i32) -> (i32, i32) {
    %c0_i32 = arith.constant 0 : i32
    %c0_i32_0 = arith.constant 0 : i32
    %c0_i32_1 = arith.constant 0 : i32
    return %c0_i32, %c0_i32_0 : i32, i32
  }
  func.func @transform_2(%arg0: i32) -> (i32, i32) {
    %c0_i32 = arith.constant 0 : i32
    %c0_i32_0 = arith.constant 0 : i32
    return %arg0, %c0_i32 : i32, i32
  }
}

module attributes {stable_mosaic.version = 11 : i64} {
  func.func @_fused_linear_kernel(%arg0: i32, %arg1: i32, %arg2: i32, %arg3: memref<16x32xbf16, #tpu.memory_space<vmem>>, %arg4: memref<32x64xbf16, #tpu.memory_space<vmem>>, %arg5: memref<1x64xf32, #tpu.memory_space<vmem>>, %arg6: memref<16x64xbf16, #tpu.memory_space<vmem>>, %arg7: memref<16x64xf32, #tpu.memory_space<vmem>>) attributes {dimension_semantics = [#tpu.dimension_semantics<parallel>, #tpu.dimension_semantics<parallel>, #tpu.dimension_semantics<arbitrary>], iteration_bounds = array<i64: 1, 1, 1>, scalar_prefetch = 0 : i64, scratch_operands = 1 : i64, tpu.core_type = #tpu.core_type<tc>, window_params = [{transform_indices = @transform_0, window_bounds = array<i64: 16, 32>}, {transform_indices = @transform_1, window_bounds = array<i64: 32, 64>}, {transform_indices = @transform_2, window_bounds = array<i64: 1, 64>}, {transform_indices = @transform_3, window_bounds = array<i64: 16, 64>}]} {
    %c0_i32 = arith.constant 0 : i32
    %0 = arith.cmpi eq, %arg2, %c0_i32 : i32
    %1 = arith.extui %0 : i1 to i32
    %c0_i32_0 = arith.constant 0 : i32
    %2 = arith.cmpi ne, %1, %c0_i32_0 : i32
    scf.if %2 {
      %c0_10 = arith.constant 0 : index
      %c0_11 = arith.constant 0 : index
      %12 = vector.load %arg5[%c0_10, %c0_11] : memref<1x64xf32, #tpu.memory_space<vmem>>, vector<1x64xf32>
      %13 = vector.shape_cast %12 : vector<1x64xf32> to vector<1x64xf32>
      %14 = vector.broadcast %13 : vector<1x64xf32> to vector<16x64xf32>
      %c0_12 = arith.constant 0 : index
      %c0_13 = arith.constant 0 : index
      %15 = vector.load %arg7[%c0_12, %c0_13] : memref<16x64xf32, #tpu.memory_space<vmem>>, vector<16x64xf32>
      tpu.vector_store %arg7[%c0_12, %c0_13], %14 {strides = array<i32>} : memref<16x64xf32, #tpu.memory_space<vmem>>, vector<16x64xf32>,
    } else {
    }
    %c0 = arith.constant 0 : index
    %c0_1 = arith.constant 0 : index
    %3 = vector.load %arg7[%c0, %c0_1] : memref<16x64xf32, #tpu.memory_space<vmem>>, vector<16x64xf32>
    %c0_2 = arith.constant 0 : index
    %c0_3 = arith.constant 0 : index
    %4 = vector.load %arg3[%c0_2, %c0_3] : memref<16x32xbf16, #tpu.memory_space<vmem>>, vector<16x32xbf16>
    %c0_4 = arith.constant 0 : index
    %c0_5 = arith.constant 0 : index
    %5 = vector.load %arg4[%c0_4, %c0_5] : memref<32x64xbf16, #tpu.memory_space<vmem>>, vector<32x64xbf16>
    %cst = arith.constant dense<0.000000e+00> : vector<16x64xf32>
    %6 = tpu.matmul %4, %5, %cst {dimension_numbers = #tpu.dot_dimension_numbers<[1], [0], [0], [1], [0, 0, 1, 1], [], []>} : vector<16x32xbf16>, vector<32x64xbf16>, vector<16x64xf32> -> vector<16x64xf32>
    %7 = arith.addf %3, %6 : vector<16x64xf32>
    %c0_6 = arith.constant 0 : index
    %c0_7 = arith.constant 0 : index
    %8 = vector.load %arg7[%c0_6, %c0_7] : memref<16x64xf32, #tpu.memory_space<vmem>>, vector<16x64xf32>
    tpu.vector_store %arg7[%c0_6, %c0_7], %7 {strides = array<i32>} : memref<16x64xf32, #tpu.memory_space<vmem>>, vector<16x64xf32>,
    %c0_i32_8 = arith.constant 0 : i32
    %9 = arith.cmpi eq, %arg2, %c0_i32_8 : i32
    %10 = arith.extui %9 : i1 to i32
    %c0_i32_9 = arith.constant 0 : i32
    %11 = arith.cmpi ne, %10, %c0_i32_9 : i32
    scf.if %11 {
      %c0_10 = arith.constant 0 : index
      %c0_11 = arith.constant 0 : index
      %12 = vector.load %arg7[%c0_10, %c0_11] : memref<16x64xf32, #tpu.memory_space<vmem>>, vector<16x64xf32>
      %cst_12 = arith.constant 0.000000e+00 : f32
      %13 = vector.broadcast %cst_12 : f32 to vector<16x64xf32>
      %14 = arith.maximumf %12, %13 : vector<16x64xf32>
      %15 = arith.truncf %14 : vector<16x64xf32> to vector<16x64xbf16>
      %c0_13 = arith.constant 0 : index
      %c0_14 = arith.constant 0 : index
      %16 = vector.load %arg6[%c0_13, %c0_14] : memref<16x64xbf16, #tpu.memory_space<vmem>>, vector<16x64xbf16>
      tpu.vector_store %arg6[%c0_13, %c0_14], %15 {strides = array<i32>} : memref<16x64xbf16, #tpu.memory_space<vmem>>, vector<16x64xbf16>,
    } else {
    }
    return
  }
  func.func @transform_0(%arg0: i32, %arg1: i32, %arg2: i32) -> (i32, i32) {
    %c0_i32 = arith.constant 0 : i32
    return %arg0, %arg2 : i32, i32
  }
  func.func @transform_1(%arg0: i32, %arg1: i32, %arg2: i32) -> (i32, i32) {
    %c0_i32 = arith.constant 0 : i32
    return %arg2, %arg1 : i32, i32
  }
  func.func @transform_2(%arg0: i32, %arg1: i32, %arg2: i32) -> (i32, i32) {
    %c0_i32 = arith.constant 0 : i32
    %c0_i32_0 = arith.constant 0 : i32
    return %c0_i32, %arg1 : i32, i32
  }
  func.func @transform_3(%arg0: i32, %arg1: i32, %arg2: i32) -> (i32, i32) {
    %c0_i32 = arith.constant 0 : i32
    return %arg0, %arg1 : i32, i32
  }
}

module attributes {stable_mosaic.version = 11 : i64} {
  func.func @_fused_linear_kernel(%arg0: i32, %arg1: i32, %arg2: i32, %arg3: memref<16x64xbf16, #tpu.memory_space<vmem>>, %arg4: memref<64x32xbf16, #tpu.memory_space<vmem>>, %arg5: memref<1x32xf32, #tpu.memory_space<vmem>>, %arg6: memref<16x32xbf16, #tpu.memory_space<vmem>>, %arg7: memref<1x32xf32, #tpu.memory_space<vmem>>, %arg8: memref<1x32xf32, #tpu.memory_space<vmem>>, %arg9: memref<16x32xbf16, #tpu.memory_space<vmem>>, %arg10: memref<16x32xf32, #tpu.memory_space<vmem>>) attributes {dimension_semantics = [#tpu.dimension_semantics<parallel>, #tpu.dimension_semantics<parallel>, #tpu.dimension_semantics<arbitrary>], iteration_bounds = array<i64: 1, 1, 1>, scalar_prefetch = 0 : i64, scratch_operands = 1 : i64, tpu.core_type = #tpu.core_type<tc>, window_params = [{transform_indices = @transform_0, window_bounds = array<i64: 16, 64>}, {transform_indices = @transform_1, window_bounds = array<i64: 64, 32>}, {transform_indices = @transform_2, window_bounds = array<i64: 1, 32>}, {transform_indices = @transform_3, window_bounds = array<i64: 16, 32>}, {transform_indices = @transform_4, window_bounds = array<i64: 1, 32>}, {transform_indices = @transform_5, window_bounds = array<i64: 1, 32>}, {transform_indices = @transform_6, window_bounds = array<i64: 16, 32>}]} {
    %c0_i32 = arith.constant 0 : i32
    %0 = arith.cmpi eq, %arg2, %c0_i32 : i32
    %1 = arith.extui %0 : i1 to i32
    %c0_i32_0 = arith.constant 0 : i32
    %2 = arith.cmpi ne, %1, %c0_i32_0 : i32
    scf.if %2 {
      %c0_10 = arith.constant 0 : index
      %c0_11 = arith.constant 0 : index
      %12 = vector.load %arg5[%c0_10, %c0_11] : memref<1x32xf32, #tpu.memory_space<vmem>>, vector<1x32xf32>
      %13 = vector.shape_cast %12 : vector<1x32xf32> to vector<1x32xf32>
      %14 = vector.broadcast %13 : vector<1x32xf32> to vector<16x32xf32>
      %c0_12 = arith.constant 0 : index
      %c0_13 = arith.constant 0 : index
      %15 = vector.load %arg10[%c0_12, %c0_13] : memref<16x32xf32, #tpu.memory_space<vmem>>, vector<16x32xf32>
      tpu.vector_store %arg10[%c0_12, %c0_13], %14 {strides = array<i32>} : memref<16x32xf32, #tpu.memory_space<vmem>>, vector<16x32xf32>,
    } else {
    }
    %c0 = arith.constant 0 : index
    %c0_1 = arith.constant 0 : index
    %3 = vector.load %arg10[%c0, %c0_1] : memref<16x32xf32, #tpu.memory_space<vmem>>, vector<16x32xf32>
    %c0_2 = arith.constant 0 : index
    %c0_3 = arith.constant 0 : index
    %4 = vector.load %arg3[%c0_2, %c0_3] : memref<16x64xbf16, #tpu.memory_space<vmem>>, vector<16x64xbf16>
    %c0_4 = arith.constant 0 : index
    %c0_5 = arith.constant 0 : index
    %5 = vector.load %arg4[%c0_4, %c0_5] : memref<64x32xbf16, #tpu.memory_space<vmem>>, vector<64x32xbf16>
    %cst = arith.constant dense<0.000000e+00> : vector<16x32xf32>
    %6 = tpu.matmul %4, %5, %cst {dimension_numbers = #tpu.dot_dimension_numbers<[1], [0], [0], [1], [0, 0, 1, 1], [], []>} : vector<16x64xbf16>, vector<64x32xbf16>, vector<16x32xf32> -> vector<16x32xf32>
    %7 = arith.addf %3, %6 : vector<16x32xf32>
    %c0_6 = arith.constant 0 : index
    %c0_7 = arith.constant 0 : index
    %8 = vector.load %arg10[%c0_6, %c0_7] : memref<16x32xf32, #tpu.memory_space<vmem>>, vector<16x32xf32>
    tpu.vector_store %arg10[%c0_6, %c0_7], %7 {strides = array<i32>} : memref<16x32xf32, #tpu.memory_space<vmem>>, vector<16x32xf32>,
    %c0_i32_8 = arith.constant 0 : i32
    %9 = arith.cmpi eq, %arg2, %c0_i32_8 : i32
    %10 = arith.extui %9 : i1 to i32
    %c0_i32_9 = arith.constant 0 : i32
    %11 = arith.cmpi ne, %10, %c0_i32_9 : i32
    scf.if %11 {
      %c0_10 = arith.constant 0 : index
      %c0_11 = arith.constant 0 : index
      %12 = vector.load %arg10[%c0_10, %c0_11] : memref<16x32xf32, #tpu.memory_space<vmem>>, vector<16x32xf32>
      %c0_12 = arith.constant 0 : index
      %c0_13 = arith.constant 0 : index
      %13 = vector.load %arg6[%c0_12, %c0_13] : memref<16x32xbf16, #tpu.memory_space<vmem>>, vector<16x32xbf16>
      %14 = arith.extf %13 : vector<16x32xbf16> to vector<16x32xf32>
      %15 = arith.addf %12, %14 : vector<16x32xf32>
      %cst_14 = arith.constant dense<0.000000e+00> : vector<16xf32>
      %16 = vector.multi_reduction <add>, %15, %cst_14 [1] : vector<16x32xf32> to vector<16xf32>
      %17 = vector.shape_cast %16 : vector<16xf32> to vector<16x1xf32>
      %cst_15 = arith.constant 3.200000e+01 : f32
      %18 = vector.broadcast %cst_15 : f32 to vector<16x1xf32>
      %19 = arith.divf %17, %18 : vector<16x1xf32>
      %20 = vector.broadcast %19 : vector<16x1xf32> to vector<16x32xf32>
      %21 = arith.subf %15, %20 : vector<16x32xf32>
      %22 = arith.mulf %21, %21 : vector<16x32xf32>
      %cst_16 = arith.constant dense<0.000000e+00> : vector<16xf32>
      %23 = vector.multi_reduction <add>, %22, %cst_16 [1] : vector<16x32xf32> to vector<16xf32>
      %24 = vector.shape_cast %23 : vector<16xf32> to vector<16x1xf32>
      %cst_17 = arith.constant 3.200000e+01 : f32
      %25 = vector.broadcast %cst_17 : f32 to vector<16x1xf32>
      %26 = arith.divf %24, %25 : vector<16x1xf32>
      %27 = vector.broadcast %19 : vector<16x1xf32> to vector<16x32xf32>
      %28 = arith.subf %15, %27 : vector<16x32xf32>
      %cst_18 = arith.constant 9.99999974E-6 : f32
      %29 = vector.broadcast %cst_18 : f32 to vector<16x1xf32>
      %30 = arith.addf %26, %29 : vector<16x1xf32>
      %31 = math.rsqrt %30 : vector<16x1xf32>
      %32 = vector.broadcast %31 : vector<16x1xf32> to vector<16x32xf32>
      %33 = arith.mulf %28, %32 : vector<16x32xf32>
      %c0_19 = arith.constant 0 : index
      %c0_20 = arith.constant 0 : index
      %34 = vector.load %arg7[%c0_19, %c0_20] : memref<1x32xf32, #tpu.memory_space<vmem>>, vector<1x32xf32>
      %35 = vector.broadcast %34 : vector<1x32xf32> to vector<16x32xf32>
      %36 = arith.mulf %33, %35 : vector<16x32xf32>
      %c0_21 = arith.constant 0 : index
      %c0_22 = arith.constant 0 : index
      %37 = vector.load %arg8[%c0_21, %c0_22] : memref<1x32xf32, #tpu.memory_space<vmem>>, vector<1x32xf32>
      %38 = vector.broadcast %37 : vector<1x32xf32> to vector<16x32xf32>
      %39 = arith.addf %36, %38 : vector<16x32xf32>
      %40 = arith.truncf %39 : vector<16x32xf32> to vector<16x32xbf16>
      %c0_23 = arith.constant 0 : index
      %c0_24 = arith.constant 0 : index
      %41 = vector.load %arg9[%c0_23, %c0_24] : memref<16x32xbf16, #tpu.memory_space<vmem>>, vector<16x32xbf16>
      tpu.vector_store %arg9[%c0_23, %c0_24], %40 {strides = array<i32>} : memref<16x32xbf16, #tpu.memory_space<vmem>>, vector<16x32xbf16>,
    } else {
    }
    return
  }
  func.func @transform_0(%arg0: i32, %arg1: i32, %arg2: i32) -> (i32, i32) {
    %c0_i32 = arith.constant 0 : i32
    return %arg0, %arg2 : i32, i32
  }
  func.func @transform_1(%arg0: i32, %arg1: i32, %arg2: i32) -> (i32, i32) {
    %c0_i32 = arith.constant 0 : i32
    return %arg2, %arg1 : i32, i32
  }
  func.func @transform_2(%arg0: i32, %arg1: i32, %arg2: i32) -> (i32, i32) {
    %c0_i32 = arith.constant 0 : i32
    %c0_i32_0 = arith.constant 0 : i32
    return %c0_i32, %arg1 : i32, i32
  }
  func.func @transform_3(%arg0: i32, %arg1: i32, %arg2: i32) -> (i32, i32) {
    %c0_i32 = arith.constant 0 : i32
    return %arg0, %arg1 : i32, i32
  }
  func.func @transform_4(%arg0: i32, %arg1: i32, %arg2: i32) -> (i32, i32) {
    %c0_i32 = arith.constant 0 : i32
    %c0_i32_0 = arith.constant 0 : i32
    return %c0_i32, %arg1 : i32, i32
  }
  func.func @transform_5(%arg0: i32, %arg1: i32, %arg2: i32) -> (i32, i32) {
    %c0_i32 = arith.constant 0 : i32
    %c0_i32_0 = arith.constant 0 : i32
    return %c0_i32, %arg1 : i32, i32
  }
  func.func @transform_6(%arg0: i32, %arg1: i32, %arg2: i32) -> (i32, i32) {
    %c0_i32 = arith.constant 0 : i32
    return %arg0, %arg1 : i32, i32
  }
}

module attributes {stable_mosaic.version = 11 : i64} {
  func.func @_fused_linear_kernel(%arg0: i32, %arg1: i32, %arg2: i32, %arg3: memref<16x32xbf16, #tpu.memory_space<vmem>>, %arg4: memref<32x256xbf16, #tpu.memory_space<vmem>>, %arg5: memref<1x256xf32, #tpu.memory_space<vmem>>, %arg6: memref<16x256xf32, #tpu.memory_space<vmem>>, %arg7: memref<16x256xf32, #tpu.memory_space<vmem>>) attributes {dimension_semantics = [#tpu.dimension_semantics<parallel>, #tpu.dimension_semantics<parallel>, #tpu.dimension_semantics<arbitrary>], iteration_bounds = array<i64: 1, 2, 1>, scalar_prefetch = 0 : i64, scratch_operands = 1 : i64, tpu.core_type = #tpu.core_type<tc>, window_params = [{transform_indices = @transform_0, window_bounds = array<i64: 16, 32>}, {transform_indices = @transform_1, window_bounds = array<i64: 32, 256>}, {transform_indices = @transform_2, window_bounds = array<i64: 1, 256>}, {transform_indices = @transform_3, window_bounds = array<i64: 16, 256>}]} {
    %c0_i32 = arith.constant 0 : i32
    %0 = arith.cmpi eq, %arg2, %c0_i32 : i32
    %1 = arith.extui %0 : i1 to i32
    %c0_i32_0 = arith.constant 0 : i32
    %2 = arith.cmpi ne, %1, %c0_i32_0 : i32
    scf.if %2 {
      %c0_10 = arith.constant 0 : index
      %c0_11 = arith.constant 0 : index
      %12 = vector.load %arg5[%c0_10, %c0_11] : memref<1x256xf32, #tpu.memory_space<vmem>>, vector<1x256xf32>
      %13 = vector.shape_cast %12 : vector<1x256xf32> to vector<1x256xf32>
      %14 = vector.broadcast %13 : vector<1x256xf32> to vector<16x256xf32>
      %c0_12 = arith.constant 0 : index
      %c0_13 = arith.constant 0 : index
      %15 = vector.load %arg7[%c0_12, %c0_13] : memref<16x256xf32, #tpu.memory_space<vmem>>, vector<16x256xf32>
      tpu.vector_store %arg7[%c0_12, %c0_13], %14 {strides = array<i32>} : memref<16x256xf32, #tpu.memory_space<vmem>>, vector<16x256xf32>,
    } else {
    }
    %c0 = arith.constant 0 : index
    %c0_1 = arith.constant 0 : index
    %3 = vector.load %arg7[%c0, %c0_1] : memref<16x256xf32, #tpu.memory_space<vmem>>, vector<16x256xf32>
    %c0_2 = arith.constant 0 : index
    %c0_3 = arith.constant 0 : index
    %4 = vector.load %arg3[%c0_2, %c0_3] : memref<16x32xbf16, #tpu.memory_space<vmem>>, vector<16x32xbf16>
    %c0_4 = arith.constant 0 : index
    %c0_5 = arith.constant 0 : index
    %5 = vector.load %arg4[%c0_4, %c0_5] : memref<32x256xbf16, #tpu.memory_space<vmem>>, vector<32x256xbf16>
    %cst = arith.constant dense<0.000000e+00> : vector<16x256xf32>
    %6 = tpu.matmul %4, %5, %cst {dimension_numbers = #tpu.dot_dimension_numbers<[1], [0], [0], [1], [0, 0, 1, 1], [], []>} : vector<16x32xbf16>, vector<32x256xbf16>, vector<16x256xf32> -> vector<16x256xf32>
    %7 = arith.addf %3, %6 : vector<16x256xf32>
    %c0_6 = arith.constant 0 : index
    %c0_7 = arith.constant 0 : index
    %8 = vector.load %arg7[%c0_6, %c0_7] : memref<16x256xf32, #tpu.memory_space<vmem>>, vector<16x256xf32>
    tpu.vector_store %arg7[%c0_6, %c0_7], %7 {strides = array<i32>} : memref<16x256xf32, #tpu.memory_space<vmem>>, vector<16x256xf32>,
    %c0_i32_8 = arith.constant 0 : i32
    %9 = arith.cmpi eq, %arg2, %c0_i32_8 : i32
    %10 = arith.extui %9 : i1 to i32
    %c0_i32_9 = arith.constant 0 : i32
    %11 = arith.cmpi ne, %10, %c0_i32_9 : i32
    scf.if %11 {
      %c0_10 = arith.constant 0 : index
      %c0_11 = arith.constant 0 : index
      %12 = vector.load %arg7[%c0_10, %c0_11] : memref<16x256xf32, #tpu.memory_space<vmem>>, vector<16x256xf32>
      %c0_12 = arith.constant 0 : index
      %c0_13 = arith.constant 0 : index
      %13 = vector.load %arg6[%c0_12, %c0_13] : memref<16x256xf32, #tpu.memory_space<vmem>>, vector<16x256xf32>
      tpu.vector_store %arg6[%c0_12, %c0_13], %12 {strides = array<i32>} : memref<16x256xf32, #tpu.memory_space<vmem>>, vector<16x256xf32>,
    } else {
    }
    return
  }
  func.func @transform_0(%arg0: i32, %arg1: i32, %arg2: i32) -> (i32, i32) {
    %c0_i32 = arith.constant 0 : i32
    return %arg0, %arg2 : i32, i32
  }
  func.func @transform_1(%arg0: i32, %arg1: i32, %arg2: i32) -> (i32, i32) {
    %c0_i32 = arith.constant 0 : i32
    return %arg2, %arg1 : i32, i32
  }
  func.func @transform_2(%arg0: i32, %arg1: i32, %arg2: i32) -> (i32, i32) {
    %c0_i32 = arith.constant 0 : i32
    %c0_i32_0 = arith.constant 0 : i32
    return %c0_i32, %arg1 : i32, i32
  }
  func.func @transform_3(%arg0: i32, %arg1: i32, %arg2: i32) -> (i32, i32) {
    %c0_i32 = arith.constant 0 : i32
    return %arg0, %arg1 : i32, i32
  }
}

</mosaic_0001>

<llo_original>
// kernel: transformer_model_forward.11
$region0: #{transformer_model_forward.11}
  #allocation0 [shape = 'u32[]', space=smem, size = 0x4, offset = 0x4, fixed_abs, tag = 'smem constant byte address 0x4 - core index']
  #allocation1 [shape = 'u32[144,128]{1,0:T(1,128)}', space=vmem, size = 0x12000, scoped, tag = 'internal scratch']
  #allocation2 [shape = 'f32[16,96]{1,0:T(8,128)}', space=vmem, size = 0x2000, scoped, tag = 'scratch operand']
  %s0 = inlined_call_operand.vmem [shape: bf16[16,32], index: 0, kind: input, shape index: {}]
  %s1 = inlined_call_operand.vmem [shape: bf16[32,96], index: 1, kind: input, shape index: {}]
  %s2 = inlined_call_operand.vmem [shape: f32[1,96], index: 2, kind: input, shape index: {}]
  %s3 = inlined_call_operand.vmem [shape: bf16[16,96], index: 3, kind: output, shape index: {}]
  %s4 = sld [smem:[#allocation0]]
  $region30: #{transformer_model_forward.11} parent=0
    _
  %s6 = ssub.s32 1, %s4
  %s7 = scalar_select 0, %s6, %s4
  // Predicated region
  $region2: #{transformer_model_forward.11} parent=0 // pred_check
    _
  $region3: #{transformer_model_forward.11} parent=0 // pred_check_branch
    %9 = sbr.rel (0) target = $region5
  $region4: #{transformer_model_forward.11} parent=0 // pred_region
    _
  $region5: #{transformer_model_forward.11} parent=0 // pred_fallthru
    _
  // Predicated region
  $region6: #{transformer_model_forward.11} parent=0 // pred_check
    _
  $region7: #{transformer_model_forward.11} parent=0 // pred_check_branch
    %11 = sbr.rel (0) target = $region9
  $region8: #{transformer_model_forward.11} parent=0 // pred_region
    _
  $region9: #{transformer_model_forward.11} parent=0 // pred_fallthru
    _
  // Predicated region
  $region10: #{transformer_model_forward.11} parent=0 // pred_check
    _
  $region11: #{transformer_model_forward.11} parent=0 // pred_check_branch
    %13 = sbr.rel (0) target = $region13
  $region12: #{transformer_model_forward.11} parent=0 // pred_region
    _
  $region13: #{transformer_model_forward.11} parent=0 // pred_fallthru
    _
  %p15 = scmp.eq.s32.totalorder 0, 0
  // Predicated region
  $region14: #{transformer_model_forward.11} parent=0 // pred_check
    %p16 = pneg %p15
  $region15: #{transformer_model_forward.11} parent=0 // pred_check_branch
    %18 = sbr.rel (%p16) target = $region17
  $region16: #{transformer_model_forward.11} parent=0 // pred_region
    %v19 = vld [vmem:[%s2] sm:$0x1]
    %v21 = vlaneseq
    %v22 = vshrl.u32 %v21, 7
    %v23 = vsub.s32 0, %v22
    %v24 = vrot.slane %v19, %v23
    %vm26 = vcmask 785408
    %27 = vst.msk [vmem:[#allocation2] sm:$0xff] %vm26, %v24
    %28 = vst.msk [vmem:[#allocation2 + $0x8] sm:$0xff] %vm26, %v24
  $region17: #{transformer_model_forward.11} parent=0 // pred_fallthru
    _
  %v29 = vld [vmem:[#allocation2] sm:$0xff]
  %v30 = vld [vmem:[#allocation2 + $0x8] sm:$0xff]
  %v31 = vld [vmem:[%s0] sm:$0xf]
  %v32 = vld [vmem:[%s0 + $0x4] sm:$0xf]
  %v33 = vld [vmem:[%s1] sm:$0xf]
  %v34 = vld [vmem:[%s1 + $0x4] sm:$0xf]
  %v35 = vld [vmem:[%s1 + $0x8] sm:$0xf]
  %v36 = vld [vmem:[%s1 + $0xc] sm:$0xf]
  %v39 = vunpack.c.l.b16 %v31
  %v40 = vunpack.c.l.b16 %v32
  %v41 = vpack.c.b16 %v40, %v39
  %v46 = vunpack.c.l.b16 %v33
  %v47 = vunpack.c.l.b16 %v34
  %v48 = vunpack.c.l.b16 %v35
  %v49 = vunpack.c.l.b16 %v36
  %v50 = vpack.c.b16 %v47, %v46
  %v51 = vpack.c.b16 %v49, %v48
  %vm54 = vcmask 261120
  %v56 = vsel %vm54, %v41, 0
  %58 = vmatprep.subr.bf16.mxu0 0
  %59 = vmatpush1.bf16.msra.mxu0 %v50
  %60 = vmatprep.subr.bf16.mxu0 0
  %61 = vmatpush1.bf16.msra.mxu0 %v51
  %62 = vmatprep.subr.bf16.mxu0 0
  %63 = vmatpush1.bf16.msra.mxu0 0
  %64 = vmatprep.subr.bf16.mxu0 0
  %65 = vmatpush1.bf16.msra.mxu0 0
  %66 = vmatprep.subr.bf16.mxu0 0
  %67 = vmatpush1.bf16.msra.mxu0 0
  %68 = vmatprep.subr.bf16.mxu0 0
  %69 = vmatpush1.bf16.msra.mxu0 0
  %70 = vmatprep.subr.bf16.mxu0 0
  %71 = vmatpush1.bf16.msra.mxu0 0
  %72 = vmatprep.subr.bf16.mxu0 0
  %73 = vmatpush1.bf16.msra.mxu0 0
  %74 = vmatprep.subr.bf16.mxu0 0
  %75 = vmatpush1.bf16.msra.mxu0 0
  %76 = vmatprep.subr.bf16.mxu0 0
  %77 = vmatpush1.bf16.msra.mxu0 0
  %78 = vmatprep.subr.bf16.mxu0 0
  %79 = vmatpush1.bf16.msra.mxu0 0
  %80 = vmatprep.subr.bf16.mxu0 0
  %81 = vmatpush1.bf16.msra.mxu0 0
  %82 = vmatprep.subr.bf16.mxu0 0
  %83 = vmatpush1.bf16.msra.mxu0 0
  %84 = vmatprep.subr.bf16.mxu0 0
  %85 = vmatpush1.bf16.msra.mxu0 0
  %86 = vmatprep.subr.bf16.mxu0 0
  %87 = vmatpush1.bf16.msra.mxu0 0
  %88 = vmatprep.subr.bf16.mxu0 0
  %89 = vmatpush1.bf16.msra.mxu0 0
  %90 = vmatprep.mubr.bf16.mxu0 0
  %91 = vmatmul.mubr.bf16.gmra.mrb[0].mxu0 %v56
  %v92 = vpop.f32.mrb[0].mxu0
  %v93 = vadd.f32 0.0, %v92
  %v94 = vpop.f32.mrb[0].mxu0
  %v95 = vpop.f32.mrb[0].mxu0
  %v96 = vadd.f32 0.0, %v95
  %v97 = vpop.f32.mrb[0].mxu0
  %98 = vdwg.mxu0
  %v99 = vadd.f32 %v29, %v93
  %v100 = vadd.f32 %v30, %v96
  %vm101 = vcmask 785408
  %102 = vst.msk [vmem:[#allocation2] sm:$0xff] %vm101, %v99
  %103 = vst.msk [vmem:[#allocation2 + $0x8] sm:$0xff] %vm101, %v100
  // Predicated region
  $region18: #{transformer_model_forward.11} parent=0 // pred_check
    %p104 = pneg %p15
  $region19: #{transformer_model_forward.11} parent=0 // pred_check_branch
    %106 = sbr.rel (%p104) target = $region21
  $region20: #{transformer_model_forward.11} parent=0 // pred_region
    %v107 = vld [vmem:[#allocation2] sm:$0xff]
    %v108 = vld [vmem:[#allocation2 + $0x8] sm:$0xff]
    %v109 = vpack.c.bf16 %v108, %v107
    %v111 = vunpack.c.l.b16 %v109
    %v112 = vunpack.c.h.b16 %v109
    %v113 = vpack.c.b16 %v111, %v111
    %v114 = vpack.c.b16 %v112, %v112
    %vm117 = vcmask 781312
    %118 = vst.msk [vmem:[%s3] sm:$0xf] %vm117, %v113
    %119 = vst.msk [vmem:[%s3 + $0x4] sm:$0xf] %vm117, %v114
  $region21: #{transformer_model_forward.11} parent=0 // pred_fallthru
    _
  // Predicated region
  $region22: #{transformer_model_forward.11} parent=0 // pred_check
    _
  $region23: #{transformer_model_forward.11} parent=0 // pred_check_branch
    %121 = sbr.rel (0) target = $region25
  $region24: #{transformer_model_forward.11} parent=0 // pred_region
    _
  $region25: #{transformer_model_forward.11} parent=0 // pred_fallthru
    _
  // Predicated region
  $region26: #{transformer_model_forward.11} parent=0 // pred_check
    _
  $region27: #{transformer_model_forward.11} parent=0 // pred_check_branch
    %123 = sbr.rel (0) target = $region29
  $region28: #{transformer_model_forward.11} parent=0 // pred_region
    _
  $region29: #{transformer_model_forward.11} parent=0 // pred_fallthru
    _

// kernel: transformer_model_forward.14
$region0: #{transformer_model_forward.14}
  #allocation0 [shape = 'u32[]', space=smem, size = 0x4, offset = 0x4, fixed_abs, tag = 'smem constant byte address 0x4 - core index']
  #allocation1 [shape = 'u32[144,128]{1,0:T(1,128)}', space=vmem, size = 0x12000, scoped, tag = 'internal scratch']
  #allocation2 [shape = 'f32[16,64]{1,0:T(8,128)}', space=vmem, size = 0x2000, scoped, tag = 'scratch operand']
  %s0 = inlined_call_operand.vmem [shape: bf16[16,32], index: 0, kind: input, shape index: {}]
  %s1 = inlined_call_operand.vmem [shape: bf16[32,64], index: 1, kind: input, shape index: {}]
  %s2 = inlined_call_operand.vmem [shape: f32[1,64], index: 2, kind: input, shape index: {}]
  %s3 = inlined_call_operand.vmem [shape: bf16[16,64], index: 3, kind: output, shape index: {}]
  %s4 = sld [smem:[#allocation0]]
  $region30: #{transformer_model_forward.14} parent=0
    _
  %s6 = ssub.s32 1, %s4
  %s7 = scalar_select 0, %s6, %s4
  // Predicated region
  $region2: #{transformer_model_forward.14} parent=0 // pred_check
    _
  $region3: #{transformer_model_forward.14} parent=0 // pred_check_branch
    %9 = sbr.rel (0) target = $region5
  $region4: #{transformer_model_forward.14} parent=0 // pred_region
    _
  $region5: #{transformer_model_forward.14} parent=0 // pred_fallthru
    _
  // Predicated region
  $region6: #{transformer_model_forward.14} parent=0 // pred_check
    _
  $region7: #{transformer_model_forward.14} parent=0 // pred_check_branch
    %11 = sbr.rel (0) target = $region9
  $region8: #{transformer_model_forward.14} parent=0 // pred_region
    _
  $region9: #{transformer_model_forward.14} parent=0 // pred_fallthru
    _
  // Predicated region
  $region10: #{transformer_model_forward.14} parent=0 // pred_check
    _
  $region11: #{transformer_model_forward.14} parent=0 // pred_check_branch
    %13 = sbr.rel (0) target = $region13
  $region12: #{transformer_model_forward.14} parent=0 // pred_region
    _
  $region13: #{transformer_model_forward.14} parent=0 // pred_fallthru
    _
  %p15 = scmp.eq.s32.totalorder 0, 0
  // Predicated region
  $region14: #{transformer_model_forward.14} parent=0 // pred_check
    %p16 = pneg %p15
  $region15: #{transformer_model_forward.14} parent=0 // pred_check_branch
    %18 = sbr.rel (%p16) target = $region17
  $region16: #{transformer_model_forward.14} parent=0 // pred_region
    %v19 = vld [vmem:[%s2] sm:$0x1]
    %v21 = vlaneseq
    %v22 = vshrl.u32 %v21, 7
    %v23 = vsub.s32 0, %v22
    %v24 = vrot.slane %v19, %v23
    %vm26 = vcmask 523264
    %27 = vst.msk [vmem:[#allocation2] sm:$0xff] %vm26, %v24
    %28 = vst.msk [vmem:[#allocation2 + $0x8] sm:$0xff] %vm26, %v24
  $region17: #{transformer_model_forward.14} parent=0 // pred_fallthru
    _
  %v29 = vld [vmem:[#allocation2] sm:$0xff]
  %v30 = vld [vmem:[#allocation2 + $0x8] sm:$0xff]
  %v31 = vld [vmem:[%s0] sm:$0xf]
  %v32 = vld [vmem:[%s0 + $0x4] sm:$0xf]
  %v33 = vld [vmem:[%s1] sm:$0xf]
  %v34 = vld [vmem:[%s1 + $0x4] sm:$0xf]
  %v35 = vld [vmem:[%s1 + $0x8] sm:$0xf]
  %v36 = vld [vmem:[%s1 + $0xc] sm:$0xf]
  %v39 = vunpack.c.l.b16 %v31
  %v40 = vunpack.c.l.b16 %v32
  %v41 = vpack.c.b16 %v40, %v39
  %v46 = vunpack.c.l.b16 %v33
  %v47 = vunpack.c.l.b16 %v34
  %v48 = vunpack.c.l.b16 %v35
  %v49 = vunpack.c.l.b16 %v36
  %v50 = vpack.c.b16 %v47, %v46
  %v51 = vpack.c.b16 %v49, %v48
  %vm54 = vcmask 261120
  %v56 = vsel %vm54, %v41, 0
  %58 = vmatprep.subr.bf16.mxu0 0
  %59 = vmatpush1.bf16.msra.mxu0 %v50
  %60 = vmatprep.subr.bf16.mxu0 0
  %61 = vmatpush1.bf16.msra.mxu0 %v51
  %62 = vmatprep.subr.bf16.mxu0 0
  %63 = vmatpush1.bf16.msra.mxu0 0
  %64 = vmatprep.subr.bf16.mxu0 0
  %65 = vmatpush1.bf16.msra.mxu0 0
  %66 = vmatprep.subr.bf16.mxu0 0
  %67 = vmatpush1.bf16.msra.mxu0 0
  %68 = vmatprep.subr.bf16.mxu0 0
  %69 = vmatpush1.bf16.msra.mxu0 0
  %70 = vmatprep.subr.bf16.mxu0 0
  %71 = vmatpush1.bf16.msra.mxu0 0
  %72 = vmatprep.subr.bf16.mxu0 0
  %73 = vmatpush1.bf16.msra.mxu0 0
  %74 = vmatprep.subr.bf16.mxu0 0
  %75 = vmatpush1.bf16.msra.mxu0 0
  %76 = vmatprep.subr.bf16.mxu0 0
  %77 = vmatpush1.bf16.msra.mxu0 0
  %78 = vmatprep.subr.bf16.mxu0 0
  %79 = vmatpush1.bf16.msra.mxu0 0
  %80 = vmatprep.subr.bf16.mxu0 0
  %81 = vmatpush1.bf16.msra.mxu0 0
  %82 = vmatprep.subr.bf16.mxu0 0
  %83 = vmatpush1.bf16.msra.mxu0 0
  %84 = vmatprep.subr.bf16.mxu0 0
  %85 = vmatpush1.bf16.msra.mxu0 0
  %86 = vmatprep.subr.bf16.mxu0 0
  %87 = vmatpush1.bf16.msra.mxu0 0
  %88 = vmatprep.subr.bf16.mxu0 0
  %89 = vmatpush1.bf16.msra.mxu0 0
  %90 = vmatprep.mubr.bf16.mxu0 0
  %91 = vmatmul.mubr.bf16.gmra.mrb[0].mxu0 %v56
  %v92 = vpop.f32.mrb[0].mxu0
  %v93 = vadd.f32 0.0, %v92
  %v94 = vpop.f32.mrb[0].mxu0
  %v95 = vpop.f32.mrb[0].mxu0
  %v96 = vadd.f32 0.0, %v95
  %v97 = vpop.f32.mrb[0].mxu0
  %98 = vdwg.mxu0
  %v99 = vadd.f32 %v29, %v93
  %v100 = vadd.f32 %v30, %v96
  %vm101 = vcmask 523264
  %102 = vst.msk [vmem:[#allocation2] sm:$0xff] %vm101, %v99
  %103 = vst.msk [vmem:[#allocation2 + $0x8] sm:$0xff] %vm101, %v100
  // Predicated region
  $region18: #{transformer_model_forward.14} parent=0 // pred_check
    %p104 = pneg %p15
  $region19: #{transformer_model_forward.14} parent=0 // pred_check_branch
    %106 = sbr.rel (%p104) target = $region21
  $region20: #{transformer_model_forward.14} parent=0 // pred_region
    %v107 = vld [vmem:[#allocation2] sm:$0xff]
    %v108 = vld [vmem:[#allocation2 + $0x8] sm:$0xff]
    %v109 = vmax.f32 %v107, 0.0
    %v110 = vmax.f32 %v108, 0.0
    %v111 = vpack.c.bf16 %v110, %v109
    %v113 = vunpack.c.l.b16 %v111
    %v114 = vunpack.c.h.b16 %v111
    %v115 = vpack.c.b16 %v113, %v113
    %v116 = vpack.c.b16 %v114, %v114
    %vm119 = vcmask 519168
    %120 = vst.msk [vmem:[%s3] sm:$0xf] %vm119, %v115
    %121 = vst.msk [vmem:[%s3 + $0x4] sm:$0xf] %vm119, %v116
  $region21: #{transformer_model_forward.14} parent=0 // pred_fallthru
    _
  // Predicated region
  $region22: #{transformer_model_forward.14} parent=0 // pred_check
    _
  $region23: #{transformer_model_forward.14} parent=0 // pred_check_branch
    %123 = sbr.rel (0) target = $region25
  $region24: #{transformer_model_forward.14} parent=0 // pred_region
    _
  $region25: #{transformer_model_forward.14} parent=0 // pred_fallthru
    _
  // Predicated region
  $region26: #{transformer_model_forward.14} parent=0 // pred_check
    _
  $region27: #{transformer_model_forward.14} parent=0 // pred_check_branch
    %125 = sbr.rel (0) target = $region29
  $region28: #{transformer_model_forward.14} parent=0 // pred_region
    _
  $region29: #{transformer_model_forward.14} parent=0 // pred_fallthru
    _

// kernel: transformer_model_forward.13
$region0: #{transformer_model_forward.13}
  #allocation0 [shape = 'u32[]', space=smem, size = 0x4, offset = 0x4, fixed_abs, tag = 'smem constant byte address 0x4 - core index']
  #allocation1 [shape = 'u32[144,128]{1,0:T(1,128)}', space=vmem, size = 0x12000, scoped, tag = 'internal scratch']
  #allocation2 [shape = 'f32[16,32]{1,0:T(8,128)}', space=vmem, size = 0x2000, scoped, tag = 'scratch operand']
  %s0 = inlined_call_operand.vmem [shape: bf16[16,32], index: 0, kind: input, shape index: {}]
  %s1 = inlined_call_operand.vmem [shape: bf16[32,32], index: 1, kind: input, shape index: {}]
  %s2 = inlined_call_operand.vmem [shape: f32[1,32], index: 2, kind: input, shape index: {}]
  %s3 = inlined_call_operand.vmem [shape: bf16[16,32], index: 3, kind: input, shape index: {}]
  %s4 = inlined_call_operand.vmem [shape: f32[1,32], index: 4, kind: input, shape index: {}]
  %s5 = inlined_call_operand.vmem [shape: f32[1,32], index: 5, kind: input, shape index: {}]
  %s6 = inlined_call_operand.vmem [shape: bf16[16,32], index: 6, kind: output, shape index: {}]
  %s7 = sld [smem:[#allocation0]]
  $region42: #{transformer_model_forward.13} parent=0
    _
  %s9 = ssub.s32 1, %s7
  %s10 = scalar_select 0, %s9, %s7
  // Predicated region
  $region2: #{transformer_model_forward.13} parent=0 // pred_check
    _
  $region3: #{transformer_model_forward.13} parent=0 // pred_check_branch
    %12 = sbr.rel (0) target = $region5
  $region4: #{transformer_model_forward.13} parent=0 // pred_region
    _
  $region5: #{transformer_model_forward.13} parent=0 // pred_fallthru
    _
  // Predicated region
  $region6: #{transformer_model_forward.13} parent=0 // pred_check
    _
  $region7: #{transformer_model_forward.13} parent=0 // pred_check_branch
    %14 = sbr.rel (0) target = $region9
  $region8: #{transformer_model_forward.13} parent=0 // pred_region
    _
  $region9: #{transformer_model_forward.13} parent=0 // pred_fallthru
    _
  // Predicated region
  $region10: #{transformer_model_forward.13} parent=0 // pred_check
    _
  $region11: #{transformer_model_forward.13} parent=0 // pred_check_branch
    %16 = sbr.rel (0) target = $region13
  $region12: #{transformer_model_forward.13} parent=0 // pred_region
    _
  $region13: #{transformer_model_forward.13} parent=0 // pred_fallthru
    _
  // Predicated region
  $region14: #{transformer_model_forward.13} parent=0 // pred_check
    _
  $region15: #{transformer_model_forward.13} parent=0 // pred_check_branch
    %18 = sbr.rel (0) target = $region17
  $region16: #{transformer_model_forward.13} parent=0 // pred_region
    _
  $region17: #{transformer_model_forward.13} parent=0 // pred_fallthru
    _
  // Predicated region
  $region18: #{transformer_model_forward.13} parent=0 // pred_check
    _
  $region19: #{transformer_model_forward.13} parent=0 // pred_check_branch
    %20 = sbr.rel (0) target = $region21
  $region20: #{transformer_model_forward.13} parent=0 // pred_region
    _
  $region21: #{transformer_model_forward.13} parent=0 // pred_fallthru
    _
  // Predicated region
  $region22: #{transformer_model_forward.13} parent=0 // pred_check
    _
  $region23: #{transformer_model_forward.13} parent=0 // pred_check_branch
    %22 = sbr.rel (0) target = $region25
  $region24: #{transformer_model_forward.13} parent=0 // pred_region
    _
  $region25: #{transformer_model_forward.13} parent=0 // pred_fallthru
    _
  %p24 = scmp.eq.s32.totalorder 0, 0
  // Predicated region
  $region26: #{transformer_model_forward.13} parent=0 // pred_check
    %p25 = pneg %p24
  $region27: #{transformer_model_forward.13} parent=0 // pred_check_branch
    %27 = sbr.rel (%p25) target = $region29
  $region28: #{transformer_model_forward.13} parent=0 // pred_region
    %v28 = vld [vmem:[%s2] sm:$0x1]
    %v30 = vlaneseq
    %v31 = vshrl.u32 %v30, 7
    %v32 = vsub.s32 0, %v31
    %v33 = vrot.slane %v28, %v32
    %vm35 = vcmask 261120
    %36 = vst.msk [vmem:[#allocation2] sm:$0xff] %vm35, %v33
    %37 = vst.msk [vmem:[#allocation2 + $0x8] sm:$0xff] %vm35, %v33
  $region29: #{transformer_model_forward.13} parent=0 // pred_fallthru
    _
  %v38 = vld [vmem:[#allocation2] sm:$0xff]
  %v39 = vld [vmem:[#allocation2 + $0x8] sm:$0xff]
  %v40 = vld [vmem:[%s0] sm:$0xf]
  %v41 = vld [vmem:[%s0 + $0x4] sm:$0xf]
  %v42 = vld [vmem:[%s1] sm:$0xf]
  %v43 = vld [vmem:[%s1 + $0x4] sm:$0xf]
  %v44 = vld [vmem:[%s1 + $0x8] sm:$0xf]
  %v45 = vld [vmem:[%s1 + $0xc] sm:$0xf]
  %v48 = vunpack.c.l.b16 %v40
  %v49 = vunpack.c.l.b16 %v41
  %v50 = vpack.c.b16 %v49, %v48
  %v55 = vunpack.c.l.b16 %v42
  %v56 = vunpack.c.l.b16 %v43
  %v57 = vunpack.c.l.b16 %v44
  %v58 = vunpack.c.l.b16 %v45
  %v59 = vpack.c.b16 %v56, %v55
  %v60 = vpack.c.b16 %v58, %v57
  %vm63 = vcmask 261120
  %v65 = vsel %vm63, %v50, 0
  %67 = vmatprep.subr.bf16.mxu0 0
  %68 = vmatpush1.bf16.msra.mxu0 %v59
  %69 = vmatprep.subr.bf16.mxu0 0
  %70 = vmatpush1.bf16.msra.mxu0 %v60
  %71 = vmatprep.subr.bf16.mxu0 0
  %72 = vmatpush1.bf16.msra.mxu0 0
  %73 = vmatprep.subr.bf16.mxu0 0
  %74 = vmatpush1.bf16.msra.mxu0 0
  %75 = vmatprep.subr.bf16.mxu0 0
  %76 = vmatpush1.bf16.msra.mxu0 0
  %77 = vmatprep.subr.bf16.mxu0 0
  %78 = vmatpush1.bf16.msra.mxu0 0
  %79 = vmatprep.subr.bf16.mxu0 0
  %80 = vmatpush1.bf16.msra.mxu0 0
  %81 = vmatprep.subr.bf16.mxu0 0
  %82 = vmatpush1.bf16.msra.mxu0 0
  %83 = vmatprep.subr.bf16.mxu0 0
  %84 = vmatpush1.bf16.msra.mxu0 0
  %85 = vmatprep.subr.bf16.mxu0 0
  %86 = vmatpush1.bf16.msra.mxu0 0
  %87 = vmatprep.subr.bf16.mxu0 0
  %88 = vmatpush1.bf16.msra.mxu0 0
  %89 = vmatprep.subr.bf16.mxu0 0
  %90 = vmatpush1.bf16.msra.mxu0 0
  %91 = vmatprep.subr.bf16.mxu0 0
  %92 = vmatpush1.bf16.msra.mxu0 0
  %93 = vmatprep.subr.bf16.mxu0 0
  %94 = vmatpush1.bf16.msra.mxu0 0
  %95 = vmatprep.subr.bf16.mxu0 0
  %96 = vmatpush1.bf16.msra.mxu0 0
  %97 = vmatprep.subr.bf16.mxu0 0
  %98 = vmatpush1.bf16.msra.mxu0 0
  %99 = vmatprep.mubr.bf16.mxu0 0
  %100 = vmatmul.mubr.bf16.gmra.mrb[0].mxu0 %v65
  %v101 = vpop.f32.mrb[0].mxu0
  %v102 = vadd.f32 0.0, %v101
  %v103 = vpop.f32.mrb[0].mxu0
  %v104 = vpop.f32.mrb[0].mxu0
  %v105 = vadd.f32 0.0, %v104
  %v106 = vpop.f32.mrb[0].mxu0
  %107 = vdwg.mxu0
  %v108 = vadd.f32 %v38, %v102
  %v109 = vadd.f32 %v39, %v105
  %110 = vst.msk [vmem:[#allocation2] sm:$0xff] %vm63, %v108
  %111 = vst.msk [vmem:[#allocation2 + $0x8] sm:$0xff] %vm63, %v109
  // Predicated region
  $region30: #{transformer_model_forward.13} parent=0 // pred_check
    %p112 = pneg %p24
  $region31: #{transformer_model_forward.13} parent=0 // pred_check_branch
    %114 = sbr.rel (%p112) target = $region33
  $region32: #{transformer_model_forward.13} parent=0 // pred_region
    %v115 = vld [vmem:[#allocation2] sm:$0xff]
    %v116 = vld [vmem:[#allocation2 + $0x8] sm:$0xff]
    %v117 = vld [vmem:[%s3] sm:$0xf]
    %v118 = vld [vmem:[%s3 + $0x4] sm:$0xf]
    %v119 = vunpack.c.l.bf16 %v117
    %v120 = vunpack.c.l.bf16 %v118
    %v121 = vadd.f32 %v115, %v119
    %v122 = vadd.f32 %v116, %v120
    %v123 = vsel %vm63, %v121, 0.0
    %124 = vadd.xlane.f32.xlu0 %v123
    %v125 = vpop.xlane.xlu0 %124
    %v126 = vsel %vm63, %v122, 0.0
    %127 = vadd.xlane.f32.xlu0 %v126
    %v128 = vpop.xlane.xlu0 %127
    %v129 = vrcp.pop 32.0
    %v130 = vmul.f32 %v125, %v129
    %v131 = vmul.f32 %v128, %v129
    %v132 = vsub.f32 %v121, %v130
    %v133 = vsub.f32 %v122, %v131
    %v134 = vmul.f32 %v132, %v132
    %v135 = vmul.f32 %v133, %v133
    %v136 = vsel %vm63, %v134, 0.0
    %137 = vadd.xlane.f32.xlu0 %v136
    %v138 = vpop.xlane.xlu0 %137
    %v139 = vsel %vm63, %v135, 0.0
    %140 = vadd.xlane.f32.xlu0 %v139
    %v141 = vpop.xlane.xlu0 %140
    %v142 = vmul.f32 %v138, %v129
    %v143 = vmul.f32 %v141, %v129
    %v144 = vadd.f32 %v142, 1e-05
    %v145 = vadd.f32 %v143, 1e-05
    %v146 = vrsqrt.pop %v144
    %v147 = vrsqrt.pop %v145
    %v148 = vmul.f32 %v132, %v146
    %v149 = vmul.f32 %v133, %v147
    %v150 = vld [vmem:[%s4] sm:$0x1]
    %v152 = vlaneseq
    %v153 = vshrl.u32 %v152, 7
    %v154 = vsub.s32 0, %v153
    %v155 = vrot.slane %v150, %v154
    %v157 = vmul.f32 %v148, %v155
    %v158 = vmul.f32 %v149, %v155
    %v159 = vld [vmem:[%s5] sm:$0x1]
    %v161 = vlaneseq
    %v162 = vshrl.u32 %v161, 7
    %v163 = vsub.s32 0, %v162
    %v164 = vrot.slane %v159, %v163
    %v166 = vadd.f32 %v157, %v164
    %v167 = vadd.f32 %v158, %v164
    %v168 = vpack.c.bf16 %v167, %v166
    %v170 = vunpack.c.l.b16 %v168
    %v171 = vunpack.c.h.b16 %v168
    %v172 = vpack.c.b16 %v170, %v170
    %v173 = vpack.c.b16 %v171, %v171
    %vm176 = vcmask 257024
    %177 = vst.msk [vmem:[%s6] sm:$0xf] %vm176, %v172
    %178 = vst.msk [vmem:[%s6 + $0x4] sm:$0xf] %vm176, %v173
  $region33: #{transformer_model_forward.13} parent=0 // pred_fallthru
    _
  // Predicated region
  $region34: #{transformer_model_forward.13} parent=0 // pred_check
    _
  $region35: #{transformer_model_forward.13} parent=0 // pred_check_branch
    %180 = sbr.rel (0) target = $region37
  $region36: #{transformer_model_forward.13} parent=0 // pred_region
    _
  $region37: #{transformer_model_forward.13} parent=0 // pred_fallthru
    _
  // Predicated region
  $region38: #{transformer_model_forward.13} parent=0 // pred_check
    _
  $region39: #{transformer_model_forward.13} parent=0 // pred_check_branch
    %182 = sbr.rel (0) target = $region41
  $region40: #{transformer_model_forward.13} parent=0 // pred_region
    _
  $region41: #{transformer_model_forward.13} parent=0 // pred_fallthru
    _

// kernel: transformer_model_forward.12
$region0: #{transformer_model_forward.12}
  #allocation0 [shape = 'u32[]', space=smem, size = 0x4, offset = 0x4, fixed_abs, tag = 'smem constant byte address 0x4 - core index']
  #allocation1 [shape = 'u32[144,128]{1,0:T(1,128)}', space=vmem, size = 0x12000, scoped, tag = 'internal scratch']
  %s0 = inlined_call_operand.vmem [shape: bf16[16,96], index: 0, kind: input, shape index: {}]
  %s1 = inlined_call_operand.vmem [shape: f32[8,8], index: 1, kind: input, shape index: {}]
  %s2 = inlined_call_operand.vmem [shape: bf16[16,32], index: 2, kind: output, shape index: {}]
  %s3 = sld [smem:[#allocation0]]
  $region41: #{transformer_model_forward.12} parent=0
    _
  %s5 = ssub.s32 1, %s3
  %s6 = scalar_select 0, %s5, %s3
  loop: start=0, step=1, limit=4
  $region2: #{transformer_model_forward.12} parent=0 // loop_pre_header
    _
  $region3: #{transformer_model_forward.12} parent=0 // loop_header
    %s8 = sphi 0, %s12
    %p9 = scmp.ge.s32.totalorder %s8, 4
    %s18 = sphi 0, %s20
    %s21 = sphi 0, %s18
    %s22 = sphi 0, %s21
    %s38 = sphi 0, %s22
    %s42 = sphi 0, %s42
    %s44 = sphi 0, %s42
    %s45 = sphi 0, %s44
    %s59 = sphi 0, %s45
    %s65 = sphi 0, %s67
    %s68 = sphi 0, %s65
    %s69 = sphi 0, %s68
    %s85 = sphi 0, %s69
  $region4: #{transformer_model_forward.12} parent=0 // loop_header_branch
    %11 = sbr.rel (%p9) target = $region8
  $region5: #{transformer_model_forward.12} parent=0 // loop_body
    %s13 = ssub.s32 %s8, 1
    %s14 = ssub.s32 %s8, 2
    %s15 = sadd.s32 %s8, 1
    %s16 = ssub.s32 %s8, %s15
    %p17 = scmp.eq.s32.totalorder %s16, 0
    %s19 = sadd.s32 %s18, 1
    %s20 = scalar_select %p17, %s18, %s19
    %p23 = pneg %p17
    %p24 = scmp.eq.s32.totalorder %s8, 1
    %p25 = por %p23, %p24
    %p26 = scmp.ne.s32.totalorder %s18, %s21
    %p27 = scmp.eq.s32.totalorder %s8, 0
    %p28 = por %p26, %p27
    %p29 = scmp.ne.s32.totalorder %s18, %s21
    %p30 = scmp.eq.s32.totalorder %s13, 1
    %p31 = por %p29, %p30
    %p32 = scmp.ne.s32.totalorder %s21, %s22
    %p33 = scmp.eq.s32.totalorder %s13, 0
    %p34 = por %p32, %p33
    %p35 = scmp.ne.s32.totalorder %s21, %s22
    %p36 = scmp.eq.s32.totalorder %s14, 1
    %p37 = por %p35, %p36
    %p39 = scmp.ne.s32.totalorder %s22, %s38
    %p40 = scmp.eq.s32.totalorder %s14, 0
    %p41 = por %p39, %p40
    %s43 = sadd.s32 %s42, 1
    %p46 = scmp.eq.s32.totalorder %s8, 1
    %p47 = scmp.ne.s32.totalorder %s42, %s44
    %p48 = scmp.eq.s32.totalorder %s8, 0
    %p49 = por %p47, %p48
    %p50 = scmp.ne.s32.totalorder %s42, %s44
    %p51 = scmp.eq.s32.totalorder %s13, 1
    %p52 = por %p50, %p51
    %p53 = scmp.ne.s32.totalorder %s44, %s45
    %p54 = scmp.eq.s32.totalorder %s13, 0
    %p55 = por %p53, %p54
    %p56 = scmp.ne.s32.totalorder %s44, %s45
    %p57 = scmp.eq.s32.totalorder %s14, 1
    %p58 = por %p56, %p57
    %p60 = scmp.ne.s32.totalorder %s45, %s59
    %p61 = scmp.eq.s32.totalorder %s14, 0
    %p62 = por %p60, %p61
    %s63 = ssub.s32 %s8, %s15
    %p64 = scmp.eq.s32.totalorder %s63, 0
    %s66 = sadd.s32 %s65, 1
    %s67 = scalar_select %p64, %s65, %s66
    %p70 = pneg %p64
    %p71 = scmp.eq.s32.totalorder %s8, 1
    %p72 = por %p70, %p71
    %p73 = scmp.ne.s32.totalorder %s65, %s68
    %p74 = scmp.eq.s32.totalorder %s8, 0
    %p75 = por %p73, %p74
    %p76 = scmp.ne.s32.totalorder %s65, %s68
    %p77 = scmp.eq.s32.totalorder %s13, 1
    %p78 = por %p76, %p77
    %p79 = scmp.ne.s32.totalorder %s68, %s69
    %p80 = scmp.eq.s32.totalorder %s13, 0
    %p81 = por %p79, %p80
    %p82 = scmp.ne.s32.totalorder %s68, %s69
    %p83 = scmp.eq.s32.totalorder %s14, 1
    %p84 = por %p82, %p83
    %p86 = scmp.ne.s32.totalorder %s69, %s85
    %p87 = scmp.eq.s32.totalorder %s14, 0
    %p88 = por %p86, %p87
    %p89 = scmp.le.s32.totalorder 1, %s8
    %p90 = scmp.lt.s32.totalorder %s8, 3
    %p91 = pnand %p89, %p90
    %p92 = pneg %p91
    // Predicated region
    $region9: #{transformer_model_forward.12} parent=5 // pred_check
      _
    $region10: #{transformer_model_forward.12} parent=5 // pred_check_branch
      %94 = sbr.rel (%p91) target = $region12
    $region11: #{transformer_model_forward.12} parent=5 // pred_region
      %s95 = ssub.s32 %s8, 1
      // Predicated region
      $region13: #{transformer_model_forward.12} parent=11 // pred_check
        %p96 = pneg %p55
      $region14: #{transformer_model_forward.12} parent=11 // pred_check_branch
        %98 = sbr.rel (%p96) target = $region16
      $region15: #{transformer_model_forward.12} parent=11 // pred_region
        _
      $region16: #{transformer_model_forward.12} parent=11 // pred_fallthru
        _
    $region12: #{transformer_model_forward.12} parent=5 // pred_fallthru
      _
    %p99 = scmp.lt.s32.totalorder %s8, 2
    // Predicated region
    $region17: #{transformer_model_forward.12} parent=5 // pred_check
      %p100 = pneg %p99
    $region18: #{transformer_model_forward.12} parent=5 // pred_check_branch
      %102 = sbr.rel (%p100) target = $region20
    $region19: #{transformer_model_forward.12} parent=5 // pred_region
      // Predicated region
      $region21: #{transformer_model_forward.12} parent=19 // pred_check
        %p103 = pneg %p28
      $region22: #{transformer_model_forward.12} parent=19 // pred_check_branch
        %105 = sbr.rel (%p103) target = $region24
      $region23: #{transformer_model_forward.12} parent=19 // pred_region
        %p106 = scmp.lt.s32.totalorder %s8, 1
        %s107 = scalar_select %p106, %s8, 1
        %s108 = smul.addr %s107, 4
        %s109 = scalar_lea.vmem %s0, %s108
      $region24: #{transformer_model_forward.12} parent=19 // pred_fallthru
        _
    $region20: #{transformer_model_forward.12} parent=5 // pred_fallthru
      _
    %p110 = scmp.le.s32.totalorder 1, %s8
    %p111 = scmp.lt.s32.totalorder %s8, 3
    %p112 = pnand %p110, %p111
    %p113 = pneg %p112
    // Predicated region
    $region25: #{transformer_model_forward.12} parent=5 // pred_check
      _
    $region26: #{transformer_model_forward.12} parent=5 // pred_check_branch
      %115 = sbr.rel (%p112) target = $region28
    $region27: #{transformer_model_forward.12} parent=5 // pred_region
      %s116 = ssub.s32 %s8, 1
      %p117 = scmp.lt.s32.totalorder %s13, 1
      %s118 = scalar_select %p117, %s13, 1
      %s119 = smul.addr %s118, 4
      %s120 = scalar_lea.vmem %s0, %s119
      %p121 = pneg %p34
      %p122 = pneg %p31
      %p123 = pneg %p55
      %p124 = pneg %p52
      %p125 = pneg %p81
      %p126 = pneg %p78
      %p127 = scmp.lt.s32.totalorder %s13, 1
      %s128 = scalar_select %p127, %s13, 1
      %s129 = smul.addr %s128, 4
      %s130 = scalar_lea.vmem %s2, %s129
      %p131 = scmp.lt.s32.totalorder %s13, 1
      %s132 = scalar_select %p131, %s13, 1
      %s133 = smul.addr %s132, 4
      %s134 = scalar_lea.vmem %s0, %s133
      %p135 = scmp.lt.s32.totalorder %s13, 1
      %s136 = scalar_select %p135, %s13, 1
      %s137 = smul.addr %s136, 4
      %s138 = scalar_lea.vmem %s2, %s137
      %v140 = vld [vmem:[%s1] sm:$0xff]
      %v141 = vld [vmem:[%s134] sm:$0xf]
      %v143 = vunpack.c.l.b16 %v141
      %v144 = vpack.c.b16 %v143, %v143
      %145 = vrot.lane.b32.xlu0 %v144, 96
      %v146 = vpop.permute.xlu0 %145
      %vm147 = vcmask 64512
      %v149 = vsel %vm147, %v141, 0
      %v152 = vsel %vm147, %v146, 0
      %154 = vmatprep.subr.bf16.mxu0 0
      %155 = vmatpush1.bf16.xpose.msra.mxu0 %v152
      %156 = vmatprep.subr.bf16.mxu0 0
      %157 = vmatpush1.bf16.xpose.msra.mxu0 0
      %158 = vmatprep.subr.bf16.mxu0 0
      %159 = vmatpush1.bf16.xpose.msra.mxu0 0
      %160 = vmatprep.subr.bf16.mxu0 0
      %161 = vmatpush1.bf16.xpose.msra.mxu0 0
      %162 = vmatprep.subr.bf16.mxu0 0
      %163 = vmatpush1.bf16.xpose.msra.mxu0 0
      %164 = vmatprep.subr.bf16.mxu0 0
      %165 = vmatpush1.bf16.xpose.msra.mxu0 0
      %166 = vmatprep.subr.bf16.mxu0 0
      %167 = vmatpush1.bf16.xpose.msra.mxu0 0
      %168 = vmatprep.subr.bf16.mxu0 0
      %169 = vmatpush1.bf16.xpose.msra.mxu0 0
      %170 = vmatprep.subr.bf16.mxu0 0
      %171 = vmatpush1.bf16.xpose.msra.mxu0 0
      %172 = vmatprep.subr.bf16.mxu0 0
      %173 = vmatpush1.bf16.xpose.msra.mxu0 0
      %174 = vmatprep.subr.bf16.mxu0 0
      %175 = vmatpush1.bf16.xpose.msra.mxu0 0
      %176 = vmatprep.subr.bf16.mxu0 0
      %177 = vmatpush1.bf16.xpose.msra.mxu0 0
      %178 = vmatprep.subr.bf16.mxu0 0
      %179 = vmatpush1.bf16.xpose.msra.mxu0 0
      %180 = vmatprep.subr.bf16.mxu0 0
      %181 = vmatpush1.bf16.xpose.msra.mxu0 0
      %182 = vmatprep.subr.bf16.mxu0 0
      %183 = vmatpush1.bf16.xpose.msra.mxu0 0
      %184 = vmatprep.subr.bf16.mxu0 0
      %185 = vmatpush1.bf16.xpose.msra.mxu0 0
      %186 = vmatprep.mubr.bf16.mxu0 0
      %187 = vmatmul.mubr.bf16.gmra.mrb[0].mxu0 %v149
      %v188 = vpop.f32.mrb[0].mxu0
      %v189 = vadd.f32 0.0, %v188
      %v190 = vpop.f32.mrb[0].mxu0
      %v191 = vpop.f32.mrb[0].mxu0
      %v192 = vpop.f32.mrb[0].mxu0
      %193 = vdwg.mxu0
      %v194 = vmul.f32 %v189, 0.35355338
      %v195 = vadd.f32 %v194, %v140
      %v196 = vsel %vm147, %v195, -inf
      %197 = vmax.xlane.f32.xlu0 %v196
      %v198 = vpop.xlane.xlu0 %197
      %v199 = vsub.f32 %v195, %v198
      %v200 = vmul.f32 %v199, 1.442695
      %v201 = vpow.pop %v200
      %v202 = vsel %vm147, %v201, 0.0
      %203 = vadd.xlane.f32.xlu0 %v202
      %v204 = vpop.xlane.xlu0 %203
      %v205 = vrcp.pop %v204
      %v206 = vmul.f32 %v201, %v205
      %v207 = vpack.c.bf16 %v206, %v206
      %208 = vrot.lane.b32.xlu0 %v144, 64
      %v209 = vpop.permute.xlu0 %208
      %v211 = vsel %vm147, %v207, 0
      %vm213 = vcmask 1043456
      %v215 = vsel %vm213, %v209, 0
      %217 = vmatprep.subr.bf16.mxu0 0
      %218 = vmatpush1.bf16.msra.mxu0 %v215
      %219 = vmatprep.subr.bf16.mxu0 0
      %220 = vmatpush1.bf16.msra.mxu0 0
      %221 = vmatprep.subr.bf16.mxu0 0
      %222 = vmatpush1.bf16.msra.mxu0 0
      %223 = vmatprep.subr.bf16.mxu0 0
      %224 = vmatpush1.bf16.msra.mxu0 0
      %225 = vmatprep.subr.bf16.mxu0 0
      %226 = vmatpush1.bf16.msra.mxu0 0
      %227 = vmatprep.subr.bf16.mxu0 0
      %228 = vmatpush1.bf16.msra.mxu0 0
      %229 = vmatprep.subr.bf16.mxu0 0
      %230 = vmatpush1.bf16.msra.mxu0 0
      %231 = vmatprep.subr.bf16.mxu0 0
      %232 = vmatpush1.bf16.msra.mxu0 0
      %233 = vmatprep.subr.bf16.mxu0 0
      %234 = vmatpush1.bf16.msra.mxu0 0
      %235 = vmatprep.subr.bf16.mxu0 0
      %236 = vmatpush1.bf16.msra.mxu0 0
      %237 = vmatprep.subr.bf16.mxu0 0
      %238 = vmatpush1.bf16.msra.mxu0 0
      %239 = vmatprep.subr.bf16.mxu0 0
      %240 = vmatpush1.bf16.msra.mxu0 0
      %241 = vmatprep.subr.bf16.mxu0 0
      %242 = vmatpush1.bf16.msra.mxu0 0
      %243 = vmatprep.subr.bf16.mxu0 0
      %244 = vmatpush1.bf16.msra.mxu0 0
      %245 = vmatprep.subr.bf16.mxu0 0
      %246 = vmatpush1.bf16.msra.mxu0 0
      %247 = vmatprep.subr.bf16.mxu0 0
      %248 = vmatpush1.bf16.msra.mxu0 0
      %249 = vmatprep.mubr.bf16.mxu0 0
      %250 = vmatmul.mubr.bf16.gmra.mrb[0].mxu0 %v211
      %v251 = vpop.f32.mrb[0].mxu0
      %v252 = vadd.f32 0.0, %v251
      %v253 = vpop.f32.mrb[0].mxu0
      %v254 = vpop.f32.mrb[0].mxu0
      %v255 = vpop.f32.mrb[0].mxu0
      %256 = vdwg.mxu0
      %v257 = vld [vmem:[%s134] sm:$0xf]
      %v259 = vunpack.c.l.b16 %v257
      %v260 = vpack.c.b16 %v259, %v259
      %261 = vrot.lane.b32.xlu0 %v260, 120
      %v262 = vpop.permute.xlu0 %261
      %263 = vrot.lane.b32.xlu0 %v260, 88
      %v264 = vpop.permute.xlu0 %263
      %v266 = vsel %vm147, %v262, 0
      %v269 = vsel %vm147, %v264, 0
      %271 = vmatprep.subr.bf16.mxu0 0
      %272 = vmatpush1.bf16.xpose.msra.mxu0 %v269
      %273 = vmatprep.subr.bf16.mxu0 0
      %274 = vmatpush1.bf16.xpose.msra.mxu0 0
      %275 = vmatprep.subr.bf16.mxu0 0
      %276 = vmatpush1.bf16.xpose.msra.mxu0 0
      %277 = vmatprep.subr.bf16.mxu0 0
      %278 = vmatpush1.bf16.xpose.msra.mxu0 0
      %279 = vmatprep.subr.bf16.mxu0 0
      %280 = vmatpush1.bf16.xpose.msra.mxu0 0
      %281 = vmatprep.subr.bf16.mxu0 0
      %282 = vmatpush1.bf16.xpose.msra.mxu0 0
      %283 = vmatprep.subr.bf16.mxu0 0
      %284 = vmatpush1.bf16.xpose.msra.mxu0 0
      %285 = vmatprep.subr.bf16.mxu0 0
      %286 = vmatpush1.bf16.xpose.msra.mxu0 0
      %287 = vmatprep.subr.bf16.mxu0 0
      %288 = vmatpush1.bf16.xpose.msra.mxu0 0
      %289 = vmatprep.subr.bf16.mxu0 0
      %290 = vmatpush1.bf16.xpose.msra.mxu0 0
      %291 = vmatprep.subr.bf16.mxu0 0
      %292 = vmatpush1.bf16.xpose.msra.mxu0 0
      %293 = vmatprep.subr.bf16.mxu0 0
      %294 = vmatpush1.bf16.xpose.msra.mxu0 0
      %295 = vmatprep.subr.bf16.mxu0 0
      %296 = vmatpush1.bf16.xpose.msra.mxu0 0
      %297 = vmatprep.subr.bf16.mxu0 0
      %298 = vmatpush1.bf16.xpose.msra.mxu0 0
      %299 = vmatprep.subr.bf16.mxu0 0
      %300 = vmatpush1.bf16.xpose.msra.mxu0 0
      %301 = vmatprep.subr.bf16.mxu0 0
      %302 = vmatpush1.bf16.xpose.msra.mxu0 0
      %303 = vmatprep.mubr.bf16.mxu0 0
      %304 = vmatmul.mubr.bf16.gmra.mrb[0].mxu0 %v266
      %v305 = vpop.f32.mrb[0].mxu0
      %v306 = vadd.f32 0.0, %v305
      %v307 = vpop.f32.mrb[0].mxu0
      %v308 = vpop.f32.mrb[0].mxu0
      %v309 = vpop.f32.mrb[0].mxu0
      %310 = vdwg.mxu0
      %v311 = vmul.f32 %v306, 0.35355338
      %v312 = vadd.f32 %v311, %v140
      %v313 = vsel %vm147, %v312, -inf
      %314 = vmax.xlane.f32.xlu0 %v313
      %v315 = vpop.xlane.xlu0 %314
      %v316 = vsub.f32 %v312, %v315
      %v317 = vmul.f32 %v316, 1.442695
      %v318 = vpow.pop %v317
      %v319 = vsel %vm147, %v318, 0.0
      %320 = vadd.xlane.f32.xlu0 %v319
      %v321 = vpop.xlane.xlu0 %320
      %v322 = vrcp.pop %v321
      %v323 = vmul.f32 %v318, %v322
      %v324 = vpack.c.bf16 %v323, %v323
      %325 = vrot.lane.b32.xlu0 %v260, 56
      %v326 = vpop.permute.xlu0 %325
      %v328 = vsel %vm147, %v324, 0
      %v331 = vsel %vm213, %v326, 0
      %333 = vmatprep.subr.bf16.mxu0 0
      %334 = vmatpush1.bf16.msra.mxu0 %v331
      %335 = vmatprep.subr.bf16.mxu0 0
      %336 = vmatpush1.bf16.msra.mxu0 0
      %337 = vmatprep.subr.bf16.mxu0 0
      %338 = vmatpush1.bf16.msra.mxu0 0
      %339 = vmatprep.subr.bf16.mxu0 0
      %340 = vmatpush1.bf16.msra.mxu0 0
      %341 = vmatprep.subr.bf16.mxu0 0
      %342 = vmatpush1.bf16.msra.mxu0 0
      %343 = vmatprep.subr.bf16.mxu0 0
      %344 = vmatpush1.bf16.msra.mxu0 0
      %345 = vmatprep.subr.bf16.mxu0 0
      %346 = vmatpush1.bf16.msra.mxu0 0
      %347 = vmatprep.subr.bf16.mxu0 0
      %348 = vmatpush1.bf16.msra.mxu0 0
      %349 = vmatprep.subr.bf16.mxu0 0
      %350 = vmatpush1.bf16.msra.mxu0 0
      %351 = vmatprep.subr.bf16.mxu0 0
      %352 = vmatpush1.bf16.msra.mxu0 0
      %353 = vmatprep.subr.bf16.mxu0 0
      %354 = vmatpush1.bf16.msra.mxu0 0
      %355 = vmatprep.subr.bf16.mxu0 0
      %356 = vmatpush1.bf16.msra.mxu0 0
      %357 = vmatprep.subr.bf16.mxu0 0
      %358 = vmatpush1.bf16.msra.mxu0 0
      %359 = vmatprep.subr.bf16.mxu0 0
      %360 = vmatpush1.bf16.msra.mxu0 0
      %361 = vmatprep.subr.bf16.mxu0 0
      %362 = vmatpush1.bf16.msra.mxu0 0
      %363 = vmatprep.subr.bf16.mxu0 0
      %364 = vmatpush1.bf16.msra.mxu0 0
      %365 = vmatprep.mubr.bf16.mxu0 0
      %366 = vmatmul.mubr.bf16.gmra.mrb[0].mxu0 %v328
      %v367 = vpop.f32.mrb[0].mxu0
      %v368 = vadd.f32 0.0, %v367
      %v369 = vpop.f32.mrb[0].mxu0
      %v370 = vpop.f32.mrb[0].mxu0
      %v371 = vpop.f32.mrb[0].mxu0
      %372 = vdwg.mxu0
      %v373 = vld [vmem:[%s134] sm:$0xf]
      %v375 = vunpack.c.l.b16 %v373
      %v376 = vpack.c.b16 %v375, %v375
      %377 = vrot.lane.b32.xlu0 %v376, 112
      %v378 = vpop.permute.xlu0 %377
      %379 = vrot.lane.b32.xlu0 %v376, 80
      %v380 = vpop.permute.xlu0 %379
      %v382 = vsel %vm147, %v378, 0
      %v385 = vsel %vm147, %v380, 0
      %387 = vmatprep.subr.bf16.mxu0 0
      %388 = vmatpush1.bf16.xpose.msra.mxu0 %v385
      %389 = vmatprep.subr.bf16.mxu0 0
      %390 = vmatpush1.bf16.xpose.msra.mxu0 0
      %391 = vmatprep.subr.bf16.mxu0 0
      %392 = vmatpush1.bf16.xpose.msra.mxu0 0
      %393 = vmatprep.subr.bf16.mxu0 0
      %394 = vmatpush1.bf16.xpose.msra.mxu0 0
      %395 = vmatprep.subr.bf16.mxu0 0
      %396 = vmatpush1.bf16.xpose.msra.mxu0 0
      %397 = vmatprep.subr.bf16.mxu0 0
      %398 = vmatpush1.bf16.xpose.msra.mxu0 0
      %399 = vmatprep.subr.bf16.mxu0 0
      %400 = vmatpush1.bf16.xpose.msra.mxu0 0
      %401 = vmatprep.subr.bf16.mxu0 0
      %402 = vmatpush1.bf16.xpose.msra.mxu0 0
      %403 = vmatprep.subr.bf16.mxu0 0
      %404 = vmatpush1.bf16.xpose.msra.mxu0 0
      %405 = vmatprep.subr.bf16.mxu0 0
      %406 = vmatpush1.bf16.xpose.msra.mxu0 0
      %407 = vmatprep.subr.bf16.mxu0 0
      %408 = vmatpush1.bf16.xpose.msra.mxu0 0
      %409 = vmatprep.subr.bf16.mxu0 0
      %410 = vmatpush1.bf16.xpose.msra.mxu0 0
      %411 = vmatprep.subr.bf16.mxu0 0
      %412 = vmatpush1.bf16.xpose.msra.mxu0 0
      %413 = vmatprep.subr.bf16.mxu0 0
      %414 = vmatpush1.bf16.xpose.msra.mxu0 0
      %415 = vmatprep.subr.bf16.mxu0 0
      %416 = vmatpush1.bf16.xpose.msra.mxu0 0
      %417 = vmatprep.subr.bf16.mxu0 0
      %418 = vmatpush1.bf16.xpose.msra.mxu0 0
      %419 = vmatprep.mubr.bf16.mxu0 0
      %420 = vmatmul.mubr.bf16.gmra.mrb[0].mxu0 %v382
      %v421 = vpop.f32.mrb[0].mxu0
      %v422 = vadd.f32 0.0, %v421
      %v423 = vpop.f32.mrb[0].mxu0
      %v424 = vpop.f32.mrb[0].mxu0
      %v425 = vpop.f32.mrb[0].mxu0
      %426 = vdwg.mxu0
      %v427 = vmul.f32 %v422, 0.35355338
      %v428 = vadd.f32 %v427, %v140
      %v429 = vsel %vm147, %v428, -inf
      %430 = vmax.xlane.f32.xlu0 %v429
      %v431 = vpop.xlane.xlu0 %430
      %v432 = vsub.f32 %v428, %v431
      %v433 = vmul.f32 %v432, 1.442695
      %v434 = vpow.pop %v433
      %v435 = vsel %vm147, %v434, 0.0
      %436 = vadd.xlane.f32.xlu0 %v435
      %v437 = vpop.xlane.xlu0 %436
      %v438 = vrcp.pop %v437
      %v439 = vmul.f32 %v434, %v438
      %v440 = vpack.c.bf16 %v439, %v439
      %441 = vrot.lane.b32.xlu0 %v376, 48
      %v442 = vpop.permute.xlu0 %441
      %v444 = vsel %vm147, %v440, 0
      %v447 = vsel %vm213, %v442, 0
      %449 = vmatprep.subr.bf16.mxu0 0
      %450 = vmatpush1.bf16.msra.mxu0 %v447
      %451 = vmatprep.subr.bf16.mxu0 0
      %452 = vmatpush1.bf16.msra.mxu0 0
      %453 = vmatprep.subr.bf16.mxu0 0
      %454 = vmatpush1.bf16.msra.mxu0 0
      %455 = vmatprep.subr.bf16.mxu0 0
      %456 = vmatpush1.bf16.msra.mxu0 0
      %457 = vmatprep.subr.bf16.mxu0 0
      %458 = vmatpush1.bf16.msra.mxu0 0
      %459 = vmatprep.subr.bf16.mxu0 0
      %460 = vmatpush1.bf16.msra.mxu0 0
      %461 = vmatprep.subr.bf16.mxu0 0
      %462 = vmatpush1.bf16.msra.mxu0 0
      %463 = vmatprep.subr.bf16.mxu0 0
      %464 = vmatpush1.bf16.msra.mxu0 0
      %465 = vmatprep.subr.bf16.mxu0 0
      %466 = vmatpush1.bf16.msra.mxu0 0
      %467 = vmatprep.subr.bf16.mxu0 0
      %468 = vmatpush1.bf16.msra.mxu0 0
      %469 = vmatprep.subr.bf16.mxu0 0
      %470 = vmatpush1.bf16.msra.mxu0 0
      %471 = vmatprep.subr.bf16.mxu0 0
      %472 = vmatpush1.bf16.msra.mxu0 0
      %473 = vmatprep.subr.bf16.mxu0 0
      %474 = vmatpush1.bf16.msra.mxu0 0
      %475 = vmatprep.subr.bf16.mxu0 0
      %476 = vmatpush1.bf16.msra.mxu0 0
      %477 = vmatprep.subr.bf16.mxu0 0
      %478 = vmatpush1.bf16.msra.mxu0 0
      %479 = vmatprep.subr.bf16.mxu0 0
      %480 = vmatpush1.bf16.msra.mxu0 0
      %481 = vmatprep.mubr.bf16.mxu0 0
      %482 = vmatmul.mubr.bf16.gmra.mrb[0].mxu0 %v444
      %v483 = vpop.f32.mrb[0].mxu0
      %v484 = vadd.f32 0.0, %v483
      %v485 = vpop.f32.mrb[0].mxu0
      %v486 = vpop.f32.mrb[0].mxu0
      %v487 = vpop.f32.mrb[0].mxu0
      %488 = vdwg.mxu0
      %v489 = vld [vmem:[%s134] sm:$0xf]
      %v491 = vunpack.c.l.b16 %v489
      %v492 = vpack.c.b16 %v491, %v491
      %493 = vrot.lane.b32.xlu0 %v492, 104
      %v494 = vpop.permute.xlu0 %493
      %495 = vrot.lane.b32.xlu0 %v492, 72
      %v496 = vpop.permute.xlu0 %495
      %v498 = vsel %vm147, %v494, 0
      %v501 = vsel %vm147, %v496, 0
      %503 = vmatprep.subr.bf16.mxu0 0
      %504 = vmatpush1.bf16.xpose.msra.mxu0 %v501
      %505 = vmatprep.subr.bf16.mxu0 0
      %506 = vmatpush1.bf16.xpose.msra.mxu0 0
      %507 = vmatprep.subr.bf16.mxu0 0
      %508 = vmatpush1.bf16.xpose.msra.mxu0 0
      %509 = vmatprep.subr.bf16.mxu0 0
      %510 = vmatpush1.bf16.xpose.msra.mxu0 0
      %511 = vmatprep.subr.bf16.mxu0 0
      %512 = vmatpush1.bf16.xpose.msra.mxu0 0
      %513 = vmatprep.subr.bf16.mxu0 0
      %514 = vmatpush1.bf16.xpose.msra.mxu0 0
      %515 = vmatprep.subr.bf16.mxu0 0
      %516 = vmatpush1.bf16.xpose.msra.mxu0 0
      %517 = vmatprep.subr.bf16.mxu0 0
      %518 = vmatpush1.bf16.xpose.msra.mxu0 0
      %519 = vmatprep.subr.bf16.mxu0 0
      %520 = vmatpush1.bf16.xpose.msra.mxu0 0
      %521 = vmatprep.subr.bf16.mxu0 0
      %522 = vmatpush1.bf16.xpose.msra.mxu0 0
      %523 = vmatprep.subr.bf16.mxu0 0
      %524 = vmatpush1.bf16.xpose.msra.mxu0 0
      %525 = vmatprep.subr.bf16.mxu0 0
      %526 = vmatpush1.bf16.xpose.msra.mxu0 0
      %527 = vmatprep.subr.bf16.mxu0 0
      %528 = vmatpush1.bf16.xpose.msra.mxu0 0
      %529 = vmatprep.subr.bf16.mxu0 0
      %530 = vmatpush1.bf16.xpose.msra.mxu0 0
      %531 = vmatprep.subr.bf16.mxu0 0
      %532 = vmatpush1.bf16.xpose.msra.mxu0 0
      %533 = vmatprep.subr.bf16.mxu0 0
      %534 = vmatpush1.bf16.xpose.msra.mxu0 0
      %535 = vmatprep.mubr.bf16.mxu0 0
      %536 = vmatmul.mubr.bf16.gmra.mrb[0].mxu0 %v498
      %v537 = vpop.f32.mrb[0].mxu0
      %v538 = vadd.f32 0.0, %v537
      %v539 = vpop.f32.mrb[0].mxu0
      %v540 = vpop.f32.mrb[0].mxu0
      %v541 = vpop.f32.mrb[0].mxu0
      %542 = vdwg.mxu0
      %v543 = vmul.f32 %v538, 0.35355338
      %v544 = vadd.f32 %v543, %v140
      %v545 = vsel %vm147, %v544, -inf
      %546 = vmax.xlane.f32.xlu0 %v545
      %v547 = vpop.xlane.xlu0 %546
      %v548 = vsub.f32 %v544, %v547
      %v549 = vmul.f32 %v548, 1.442695
      %v550 = vpow.pop %v549
      %v551 = vsel %vm147, %v550, 0.0
      %552 = vadd.xlane.f32.xlu0 %v551
      %v553 = vpop.xlane.xlu0 %552
      %v554 = vrcp.pop %v553
      %v555 = vmul.f32 %v550, %v554
      %v556 = vpack.c.bf16 %v555, %v555
      %557 = vrot.lane.b32.xlu0 %v492, 40
      %v558 = vpop.permute.xlu0 %557
      %v560 = vsel %vm147, %v556, 0
      %v563 = vsel %vm213, %v558, 0
      %565 = vmatprep.subr.bf16.mxu0 0
      %566 = vmatpush1.bf16.msra.mxu0 %v563
      %567 = vmatprep.subr.bf16.mxu0 0
      %568 = vmatpush1.bf16.msra.mxu0 0
      %569 = vmatprep.subr.bf16.mxu0 0
      %570 = vmatpush1.bf16.msra.mxu0 0
      %571 = vmatprep.subr.bf16.mxu0 0
      %572 = vmatpush1.bf16.msra.mxu0 0
      %573 = vmatprep.subr.bf16.mxu0 0
      %574 = vmatpush1.bf16.msra.mxu0 0
      %575 = vmatprep.subr.bf16.mxu0 0
      %576 = vmatpush1.bf16.msra.mxu0 0
      %577 = vmatprep.subr.bf16.mxu0 0
      %578 = vmatpush1.bf16.msra.mxu0 0
      %579 = vmatprep.subr.bf16.mxu0 0
      %580 = vmatpush1.bf16.msra.mxu0 0
      %581 = vmatprep.subr.bf16.mxu0 0
      %582 = vmatpush1.bf16.msra.mxu0 0
      %583 = vmatprep.subr.bf16.mxu0 0
      %584 = vmatpush1.bf16.msra.mxu0 0
      %585 = vmatprep.subr.bf16.mxu0 0
      %586 = vmatpush1.bf16.msra.mxu0 0
      %587 = vmatprep.subr.bf16.mxu0 0
      %588 = vmatpush1.bf16.msra.mxu0 0
      %589 = vmatprep.subr.bf16.mxu0 0
      %590 = vmatpush1.bf16.msra.mxu0 0
      %591 = vmatprep.subr.bf16.mxu0 0
      %592 = vmatpush1.bf16.msra.mxu0 0
      %593 = vmatprep.subr.bf16.mxu0 0
      %594 = vmatpush1.bf16.msra.mxu0 0
      %595 = vmatprep.subr.bf16.mxu0 0
      %596 = vmatpush1.bf16.msra.mxu0 0
      %597 = vmatprep.mubr.bf16.mxu0 0
      %598 = vmatmul.mubr.bf16.gmra.mrb[0].mxu0 %v560
      %v599 = vpop.f32.mrb[0].mxu0
      %v600 = vadd.f32 0.0, %v599
      %v601 = vpop.f32.mrb[0].mxu0
      %v602 = vpop.f32.mrb[0].mxu0
      %v603 = vpop.f32.mrb[0].mxu0
      %604 = vdwg.mxu0
      %606 = vrot.lane.b32.xlu0 %v368, 8
      %v607 = vpop.permute.xlu0 %606
      %610 = vrot.lane.b32.xlu0 %v484, 16
      %v611 = vpop.permute.xlu0 %610
      %614 = vrot.lane.b32.xlu0 %v600, 24
      %v615 = vpop.permute.xlu0 %614
      %v617 = vsel %vm147, %v252, %v607
      %vm618 = vcmask 130048
      %v619 = vsel %vm618, %v617, %v611
      %vm620 = vcmask 195584
      %v621 = vsel %vm620, %v619, %v615
      %v622 = vpack.c.bf16 %v621, %v621
      %vm623 = vcmask 257024
      %624 = vst.msk [vmem:[%s138] sm:$0xf] %vm623, %v622
      %p625 = scmp.lt.s32.totalorder %s13, 1
      %s626 = scalar_select %p625, %s13, 1
      %s627 = smul.addr %s626, 4
      %s628 = scalar_lea.vmem %s2, %s627
      // Predicated region
      $region29: #{transformer_model_forward.12} parent=27 // pred_check
        %p629 = pneg %p78
      $region30: #{transformer_model_forward.12} parent=27 // pred_check_branch
        %631 = sbr.rel (%p629) target = $region32
      $region31: #{transformer_model_forward.12} parent=27 // pred_region
        _
      $region32: #{transformer_model_forward.12} parent=27 // pred_fallthru
        _
    $region28: #{transformer_model_forward.12} parent=5 // pred_fallthru
      _
    %p632 = scmp.le.s32.totalorder 2, %s8
    // Predicated region
    $region33: #{transformer_model_forward.12} parent=5 // pred_check
      %p633 = pneg %p632
    $region34: #{transformer_model_forward.12} parent=5 // pred_check_branch
      %635 = sbr.rel (%p633) target = $region36
    $region35: #{transformer_model_forward.12} parent=5 // pred_region
      %s636 = ssub.s32 %s8, 2
      // Predicated region
      $region37: #{transformer_model_forward.12} parent=35 // pred_check
        %p637 = pneg %p84
      $region38: #{transformer_model_forward.12} parent=35 // pred_check_branch
        %639 = sbr.rel (%p637) target = $region40
      $region39: #{transformer_model_forward.12} parent=35 // pred_region
        %p640 = scmp.lt.s32.totalorder %s14, 1
        %s641 = scalar_select %p640, %s14, 1
        %s642 = smul.addr %s641, 4
        %s643 = scalar_lea.vmem %s2, %s642
      $region40: #{transformer_model_forward.12} parent=35 // pred_fallthru
        _
    $region36: #{transformer_model_forward.12} parent=5 // pred_fallthru
      _
  $region6: #{transformer_model_forward.12} parent=0 // loop_footer
    %s12 = sadd.s32 1, %s8
  $region7: #{transformer_model_forward.12} parent=0 // loop_footer_branch
    %7 = sbr.rel target = $region3
  $region8: #{transformer_model_forward.12} parent=0 // loop_exit
    _

// kernel: transformer_model_forward.15
$region0: #{transformer_model_forward.15}
  #allocation0 [shape = 'u32[]', space=smem, size = 0x4, offset = 0x4, fixed_abs, tag = 'smem constant byte address 0x4 - core index']
  #allocation1 [shape = 'u32[144,128]{1,0:T(1,128)}', space=vmem, size = 0x12000, scoped, tag = 'internal scratch']
  #allocation2 [shape = 'f32[16,32]{1,0:T(8,128)}', space=vmem, size = 0x2000, scoped, tag = 'scratch operand']
  %s0 = inlined_call_operand.vmem [shape: bf16[16,64], index: 0, kind: input, shape index: {}]
  %s1 = inlined_call_operand.vmem [shape: bf16[64,32], index: 1, kind: input, shape index: {}]
  %s2 = inlined_call_operand.vmem [shape: f32[1,32], index: 2, kind: input, shape index: {}]
  %s3 = inlined_call_operand.vmem [shape: bf16[16,32], index: 3, kind: input, shape index: {}]
  %s4 = inlined_call_operand.vmem [shape: f32[1,32], index: 4, kind: input, shape index: {}]
  %s5 = inlined_call_operand.vmem [shape: f32[1,32], index: 5, kind: input, shape index: {}]
  %s6 = inlined_call_operand.vmem [shape: bf16[16,32], index: 6, kind: output, shape index: {}]
  %s7 = sld [smem:[#allocation0]]
  $region42: #{transformer_model_forward.15} parent=0
    _
  %s9 = ssub.s32 1, %s7
  %s10 = scalar_select 0, %s9, %s7
  // Predicated region
  $region2: #{transformer_model_forward.15} parent=0 // pred_check
    _
  $region3: #{transformer_model_forward.15} parent=0 // pred_check_branch
    %12 = sbr.rel (0) target = $region5
  $region4: #{transformer_model_forward.15} parent=0 // pred_region
    _
  $region5: #{transformer_model_forward.15} parent=0 // pred_fallthru
    _
  // Predicated region
  $region6: #{transformer_model_forward.15} parent=0 // pred_check
    _
  $region7: #{transformer_model_forward.15} parent=0 // pred_check_branch
    %14 = sbr.rel (0) target = $region9
  $region8: #{transformer_model_forward.15} parent=0 // pred_region
    _
  $region9: #{transformer_model_forward.15} parent=0 // pred_fallthru
    _
  // Predicated region
  $region10: #{transformer_model_forward.15} parent=0 // pred_check
    _
  $region11: #{transformer_model_forward.15} parent=0 // pred_check_branch
    %16 = sbr.rel (0) target = $region13
  $region12: #{transformer_model_forward.15} parent=0 // pred_region
    _
  $region13: #{transformer_model_forward.15} parent=0 // pred_fallthru
    _
  // Predicated region
  $region14: #{transformer_model_forward.15} parent=0 // pred_check
    _
  $region15: #{transformer_model_forward.15} parent=0 // pred_check_branch
    %18 = sbr.rel (0) target = $region17
  $region16: #{transformer_model_forward.15} parent=0 // pred_region
    _
  $region17: #{transformer_model_forward.15} parent=0 // pred_fallthru
    _
  // Predicated region
  $region18: #{transformer_model_forward.15} parent=0 // pred_check
    _
  $region19: #{transformer_model_forward.15} parent=0 // pred_check_branch
    %20 = sbr.rel (0) target = $region21
  $region20: #{transformer_model_forward.15} parent=0 // pred_region
    _
  $region21: #{transformer_model_forward.15} parent=0 // pred_fallthru
    _
  // Predicated region
  $region22: #{transformer_model_forward.15} parent=0 // pred_check
    _
  $region23: #{transformer_model_forward.15} parent=0 // pred_check_branch
    %22 = sbr.rel (0) target = $region25
  $region24: #{transformer_model_forward.15} parent=0 // pred_region
    _
  $region25: #{transformer_model_forward.15} parent=0 // pred_fallthru
    _
  %p24 = scmp.eq.s32.totalorder 0, 0
  // Predicated region
  $region26: #{transformer_model_forward.15} parent=0 // pred_check
    %p25 = pneg %p24
  $region27: #{transformer_model_forward.15} parent=0 // pred_check_branch
    %27 = sbr.rel (%p25) target = $region29
  $region28: #{transformer_model_forward.15} parent=0 // pred_region
    %v28 = vld [vmem:[%s2] sm:$0x1]
    %v30 = vlaneseq
    %v31 = vshrl.u32 %v30, 7
    %v32 = vsub.s32 0, %v31
    %v33 = vrot.slane %v28, %v32
    %vm35 = vcmask 261120
    %36 = vst.msk [vmem:[#allocation2] sm:$0xff] %vm35, %v33
    %37 = vst.msk [vmem:[#allocation2 + $0x8] sm:$0xff] %vm35, %v33
  $region29: #{transformer_model_forward.15} parent=0 // pred_fallthru
    _
  %v38 = vld [vmem:[#allocation2] sm:$0xff]
  %v39 = vld [vmem:[#allocation2 + $0x8] sm:$0xff]
  %v40 = vld [vmem:[%s0] sm:$0xf]
  %v41 = vld [vmem:[%s0 + $0x4] sm:$0xf]
  %v42 = vld [vmem:[%s1] sm:$0xf]
  %v43 = vld [vmem:[%s1 + $0x4] sm:$0xf]
  %v44 = vld [vmem:[%s1 + $0x8] sm:$0xf]
  %v45 = vld [vmem:[%s1 + $0xc] sm:$0xf]
  %v46 = vld [vmem:[%s1 + $0x10] sm:$0xf]
  %v47 = vld [vmem:[%s1 + $0x14] sm:$0xf]
  %v48 = vld [vmem:[%s1 + $0x18] sm:$0xf]
  %v49 = vld [vmem:[%s1 + $0x1c] sm:$0xf]
  %v52 = vunpack.c.l.b16 %v40
  %v53 = vunpack.c.l.b16 %v41
  %v54 = vpack.c.b16 %v53, %v52
  %v63 = vunpack.c.l.b16 %v42
  %v64 = vunpack.c.l.b16 %v43
  %v65 = vunpack.c.l.b16 %v44
  %v66 = vunpack.c.l.b16 %v45
  %v67 = vunpack.c.l.b16 %v46
  %v68 = vunpack.c.l.b16 %v47
  %v69 = vunpack.c.l.b16 %v48
  %v70 = vunpack.c.l.b16 %v49
  %v71 = vpack.c.b16 %v64, %v63
  %v72 = vpack.c.b16 %v66, %v65
  %v73 = vpack.c.b16 %v68, %v67
  %v74 = vpack.c.b16 %v70, %v69
  %vm79 = vcmask 523264
  %v81 = vsel %vm79, %v54, 0
  %83 = vmatprep.subr.bf16.mxu0 0
  %84 = vmatpush1.bf16.msra.mxu0 %v71
  %85 = vmatprep.subr.bf16.mxu0 0
  %86 = vmatpush1.bf16.msra.mxu0 %v72
  %87 = vmatprep.subr.bf16.mxu0 0
  %88 = vmatpush1.bf16.msra.mxu0 %v73
  %89 = vmatprep.subr.bf16.mxu0 0
  %90 = vmatpush1.bf16.msra.mxu0 %v74
  %91 = vmatprep.subr.bf16.mxu0 0
  %92 = vmatpush1.bf16.msra.mxu0 0
  %93 = vmatprep.subr.bf16.mxu0 0
  %94 = vmatpush1.bf16.msra.mxu0 0
  %95 = vmatprep.subr.bf16.mxu0 0
  %96 = vmatpush1.bf16.msra.mxu0 0
  %97 = vmatprep.subr.bf16.mxu0 0
  %98 = vmatpush1.bf16.msra.mxu0 0
  %99 = vmatprep.subr.bf16.mxu0 0
  %100 = vmatpush1.bf16.msra.mxu0 0
  %101 = vmatprep.subr.bf16.mxu0 0
  %102 = vmatpush1.bf16.msra.mxu0 0
  %103 = vmatprep.subr.bf16.mxu0 0
  %104 = vmatpush1.bf16.msra.mxu0 0
  %105 = vmatprep.subr.bf16.mxu0 0
  %106 = vmatpush1.bf16.msra.mxu0 0
  %107 = vmatprep.subr.bf16.mxu0 0
  %108 = vmatpush1.bf16.msra.mxu0 0
  %109 = vmatprep.subr.bf16.mxu0 0
  %110 = vmatpush1.bf16.msra.mxu0 0
  %111 = vmatprep.subr.bf16.mxu0 0
  %112 = vmatpush1.bf16.msra.mxu0 0
  %113 = vmatprep.subr.bf16.mxu0 0
  %114 = vmatpush1.bf16.msra.mxu0 0
  %115 = vmatprep.mubr.bf16.mxu0 0
  %116 = vmatmul.mubr.bf16.gmra.mrb[0].mxu0 %v81
  %v117 = vpop.f32.mrb[0].mxu0
  %v118 = vadd.f32 0.0, %v117
  %v119 = vpop.f32.mrb[0].mxu0
  %v120 = vpop.f32.mrb[0].mxu0
  %v121 = vadd.f32 0.0, %v120
  %v122 = vpop.f32.mrb[0].mxu0
  %123 = vdwg.mxu0
  %v124 = vadd.f32 %v38, %v118
  %v125 = vadd.f32 %v39, %v121
  %vm126 = vcmask 261120
  %127 = vst.msk [vmem:[#allocation2] sm:$0xff] %vm126, %v124
  %128 = vst.msk [vmem:[#allocation2 + $0x8] sm:$0xff] %vm126, %v125
  // Predicated region
  $region30: #{transformer_model_forward.15} parent=0 // pred_check
    %p129 = pneg %p24
  $region31: #{transformer_model_forward.15} parent=0 // pred_check_branch
    %131 = sbr.rel (%p129) target = $region33
  $region32: #{transformer_model_forward.15} parent=0 // pred_region
    %v132 = vld [vmem:[#allocation2] sm:$0xff]
    %v133 = vld [vmem:[#allocation2 + $0x8] sm:$0xff]
    %v134 = vld [vmem:[%s3] sm:$0xf]
    %v135 = vld [vmem:[%s3 + $0x4] sm:$0xf]
    %v136 = vunpack.c.l.bf16 %v134
    %v137 = vunpack.c.l.bf16 %v135
    %v138 = vadd.f32 %v132, %v136
    %v139 = vadd.f32 %v133, %v137
    %v140 = vsel %vm126, %v138, 0.0
    %141 = vadd.xlane.f32.xlu0 %v140
    %v142 = vpop.xlane.xlu0 %141
    %v143 = vsel %vm126, %v139, 0.0
    %144 = vadd.xlane.f32.xlu0 %v143
    %v145 = vpop.xlane.xlu0 %144
    %v146 = vrcp.pop 32.0
    %v147 = vmul.f32 %v142, %v146
    %v148 = vmul.f32 %v145, %v146
    %v149 = vsub.f32 %v138, %v147
    %v150 = vsub.f32 %v139, %v148
    %v151 = vmul.f32 %v149, %v149
    %v152 = vmul.f32 %v150, %v150
    %v153 = vsel %vm126, %v151, 0.0
    %154 = vadd.xlane.f32.xlu0 %v153
    %v155 = vpop.xlane.xlu0 %154
    %v156 = vsel %vm126, %v152, 0.0
    %157 = vadd.xlane.f32.xlu0 %v156
    %v158 = vpop.xlane.xlu0 %157
    %v159 = vmul.f32 %v155, %v146
    %v160 = vmul.f32 %v158, %v146
    %v161 = vadd.f32 %v159, 1e-05
    %v162 = vadd.f32 %v160, 1e-05
    %v163 = vrsqrt.pop %v161
    %v164 = vrsqrt.pop %v162
    %v165 = vmul.f32 %v149, %v163
    %v166 = vmul.f32 %v150, %v164
    %v167 = vld [vmem:[%s4] sm:$0x1]
    %v169 = vlaneseq
    %v170 = vshrl.u32 %v169, 7
    %v171 = vsub.s32 0, %v170
    %v172 = vrot.slane %v167, %v171
    %v174 = vmul.f32 %v165, %v172
    %v175 = vmul.f32 %v166, %v172
    %v176 = vld [vmem:[%s5] sm:$0x1]
    %v178 = vlaneseq
    %v179 = vshrl.u32 %v178, 7
    %v180 = vsub.s32 0, %v179
    %v181 = vrot.slane %v176, %v180
    %v183 = vadd.f32 %v174, %v181
    %v184 = vadd.f32 %v175, %v181
    %v185 = vpack.c.bf16 %v184, %v183
    %v187 = vunpack.c.l.b16 %v185
    %v188 = vunpack.c.h.b16 %v185
    %v189 = vpack.c.b16 %v187, %v187
    %v190 = vpack.c.b16 %v188, %v188
    %vm193 = vcmask 257024
    %194 = vst.msk [vmem:[%s6] sm:$0xf] %vm193, %v189
    %195 = vst.msk [vmem:[%s6 + $0x4] sm:$0xf] %vm193, %v190
  $region33: #{transformer_model_forward.15} parent=0 // pred_fallthru
    _
  // Predicated region
  $region34: #{transformer_model_forward.15} parent=0 // pred_check
    _
  $region35: #{transformer_model_forward.15} parent=0 // pred_check_branch
    %197 = sbr.rel (0) target = $region37
  $region36: #{transformer_model_forward.15} parent=0 // pred_region
    _
  $region37: #{transformer_model_forward.15} parent=0 // pred_fallthru
    _
  // Predicated region
  $region38: #{transformer_model_forward.15} parent=0 // pred_check
    _
  $region39: #{transformer_model_forward.15} parent=0 // pred_check_branch
    %199 = sbr.rel (0) target = $region41
  $region40: #{transformer_model_forward.15} parent=0 // pred_region
    _
  $region41: #{transformer_model_forward.15} parent=0 // pred_fallthru
    _

// kernel: transformer_model_forward.21
$region0: #{transformer_model_forward.21}
  #allocation0 [shape = 'u32[]', space=smem, size = 0x4, offset = 0x4, fixed_abs, tag = 'smem constant byte address 0x4 - core index']
  #allocation1 [shape = 'u32[144,128]{1,0:T(1,128)}', space=vmem, size = 0x12000, scoped, tag = 'internal scratch']
  #allocation2 [shape = 'f32[16,256]{1,0:T(8,128)}', space=vmem, size = 0x4000, scoped, tag = 'scratch operand']
  %s0 = inlined_call_operand.vmem [shape: bf16[16,32], index: 0, kind: input, shape index: {}]
  %s1 = inlined_call_operand.vmem [shape: bf16[32,512], index: 1, kind: input, shape index: {}]
  %s2 = inlined_call_operand.vmem [shape: f32[1,512], index: 2, kind: input, shape index: {}]
  %s3 = inlined_call_operand.vmem [shape: f32[16,512], index: 3, kind: output, shape index: {}]
  %s4 = sld [smem:[#allocation0]]
  $region110: #{transformer_model_forward.21} parent=0
    _
  %s6 = ssub.s32 1, %s4
  %s7 = scalar_select 0, %s6, %s4
  $region1: #{transformer_model_forward.21} parent=0
    #allocation3 [shape = 'u8[32768]{0}', space=vmem, size = 0x8000, scoped, tag = 'input window, operand 1']
    #allocation4 [shape = 'u8[32768]{0}', space=vmem, size = 0x8000, scoped, tag = 'output window, operand 0']
    loop: start=0, step=1, limit=4
    $region2: #{transformer_model_forward.21} parent=1 // loop_pre_header
      _
    $region3: #{transformer_model_forward.21} parent=1 // loop_header
      %s9 = sphi 0, %s13
      %p10 = scmp.ge.s32.totalorder %s9, 4
      %s16 = sphi 0, %s35
      %s17 = sphi 0, %s31
      %s18 = sphi 0, %s27
      %s19 = sphi 0, %s16
      %s20 = sphi 0, %s17
      %s21 = sphi 0, %s18
      %s22 = sphi 0, %s19
      %s23 = sphi 0, %s20
      %s24 = sphi 0, %s21
      %s40 = sphi 0, %s42
      %s43 = sphi 0, %s40
      %s44 = sphi 0, %s43
      %s60 = sphi 0, %s44
      %s68 = sphi 0, %s70
      %s71 = sphi 0, %s68
      %s72 = sphi 0, %s71
      %s88 = sphi 0, %s72
      %s94 = sphi 0, %s96
      %s97 = sphi 0, %s94
      %s98 = sphi 0, %s97
      %s114 = sphi 0, %s98
      %s122 = sphi 0, %s124
      %s125 = sphi 0, %s122
      %s126 = sphi 0, %s125
      %s142 = sphi 0, %s126
    $region4: #{transformer_model_forward.21} parent=1 // loop_header_branch
      %12 = sbr.rel (%p10) target = $region8
    $region5: #{transformer_model_forward.21} parent=1 // loop_body
      %s14 = ssub.s32 %s9, 1
      %s15 = ssub.s32 %s9, 2
      %s25 = sadd.s32 1, %s18
      %p26 = scmp.ge.s32.totalorder %s25, 1
      %s27 = scalar_select %p26, 0, %s25
      %s28 = sadd.s32 1, %s17
      %s29 = scalar_select %p26, %s28, %s17
      %p30 = scmp.ge.s32.totalorder %s29, 2
      %s31 = scalar_select %p30, 0, %s29
      %s32 = sadd.s32 1, %s16
      %s33 = scalar_select %p30, %s32, %s16
      %p34 = scmp.ge.s32.totalorder %s33, 1
      %s35 = scalar_select %p34, 0, %s33
      %s36 = ssub.s32 %s16, %s35
      %s37 = ssub.s32 %s18, %s27
      %s38 = sor.u32 %s36, %s37
      %p39 = scmp.eq.s32.totalorder %s38, 0
      %s41 = sadd.s32 %s40, 1
      %s42 = scalar_select %p39, %s40, %s41
      %p45 = pneg %p39
      %p46 = scmp.eq.s32.totalorder %s9, 1
      %p47 = por %p45, %p46
      %p48 = scmp.ne.s32.totalorder %s40, %s43
      %p49 = scmp.eq.s32.totalorder %s9, 0
      %p50 = por %p48, %p49
      %p51 = scmp.ne.s32.totalorder %s40, %s43
      %p52 = scmp.eq.s32.totalorder %s14, 1
      %p53 = por %p51, %p52
      %p54 = scmp.ne.s32.totalorder %s43, %s44
      %p55 = scmp.eq.s32.totalorder %s14, 0
      %p56 = por %p54, %p55
      %p57 = scmp.ne.s32.totalorder %s43, %s44
      %p58 = scmp.eq.s32.totalorder %s15, 1
      %p59 = por %p57, %p58
      %p61 = scmp.ne.s32.totalorder %s44, %s60
      %p62 = scmp.eq.s32.totalorder %s15, 0
      %p63 = por %p61, %p62
      %s64 = ssub.s32 %s18, %s27
      %s65 = ssub.s32 %s17, %s31
      %s66 = sor.u32 %s64, %s65
      %p67 = scmp.eq.s32.totalorder %s66, 0
      %s69 = sadd.s32 %s68, 1
      %s70 = scalar_select %p67, %s68, %s69
      %p73 = pneg %p67
      %p74 = scmp.eq.s32.totalorder %s9, 1
      %p75 = por %p73, %p74
      %p76 = scmp.ne.s32.totalorder %s68, %s71
      %p77 = scmp.eq.s32.totalorder %s9, 0
      %p78 = por %p76, %p77
      %p79 = scmp.ne.s32.totalorder %s68, %s71
      %p80 = scmp.eq.s32.totalorder %s14, 1
      %p81 = por %p79, %p80
      %p82 = scmp.ne.s32.totalorder %s71, %s72
      %p83 = scmp.eq.s32.totalorder %s14, 0
      %p84 = por %p82, %p83
      %p85 = scmp.ne.s32.totalorder %s71, %s72
      %p86 = scmp.eq.s32.totalorder %s15, 1
      %p87 = por %p85, %p86
      %p89 = scmp.ne.s32.totalorder %s72, %s88
      %p90 = scmp.eq.s32.totalorder %s15, 0
      %p91 = por %p89, %p90
      %s92 = ssub.s32 %s17, %s31
      %p93 = scmp.eq.s32.totalorder %s92, 0
      %s95 = sadd.s32 %s94, 1
      %s96 = scalar_select %p93, %s94, %s95
      %p99 = pneg %p93
      %p100 = scmp.eq.s32.totalorder %s9, 1
      %p101 = por %p99, %p100
      %p102 = scmp.ne.s32.totalorder %s94, %s97
      %p103 = scmp.eq.s32.totalorder %s9, 0
      %p104 = por %p102, %p103
      %p105 = scmp.ne.s32.totalorder %s94, %s97
      %p106 = scmp.eq.s32.totalorder %s14, 1
      %p107 = por %p105, %p106
      %p108 = scmp.ne.s32.totalorder %s97, %s98
      %p109 = scmp.eq.s32.totalorder %s14, 0
      %p110 = por %p108, %p109
      %p111 = scmp.ne.s32.totalorder %s97, %s98
      %p112 = scmp.eq.s32.totalorder %s15, 1
      %p113 = por %p111, %p112
      %p115 = scmp.ne.s32.totalorder %s98, %s114
      %p116 = scmp.eq.s32.totalorder %s15, 0
      %p117 = por %p115, %p116
      %s118 = ssub.s32 %s16, %s35
      %s119 = ssub.s32 %s17, %s31
      %s120 = sor.u32 %s118, %s119
      %p121 = scmp.eq.s32.totalorder %s120, 0
      %s123 = sadd.s32 %s122, 1
      %s124 = scalar_select %p121, %s122, %s123
      %p127 = pneg %p121
      %p128 = scmp.eq.s32.totalorder %s9, 1
      %p129 = por %p127, %p128
      %p130 = scmp.ne.s32.totalorder %s122, %s125
      %p131 = scmp.eq.s32.totalorder %s9, 0
      %p132 = por %p130, %p131
      %p133 = scmp.ne.s32.totalorder %s122, %s125
      %p134 = scmp.eq.s32.totalorder %s14, 1
      %p135 = por %p133, %p134
      %p136 = scmp.ne.s32.totalorder %s125, %s126
      %p137 = scmp.eq.s32.totalorder %s14, 0
      %p138 = por %p136, %p137
      %p139 = scmp.ne.s32.totalorder %s125, %s126
      %p140 = scmp.eq.s32.totalorder %s15, 1
      %p141 = por %p139, %p140
      %p143 = scmp.ne.s32.totalorder %s126, %s142
      %p144 = scmp.eq.s32.totalorder %s15, 0
      %p145 = por %p143, %p144
      %p146 = scmp.le.s32.totalorder 1, %s9
      %p147 = scmp.lt.s32.totalorder %s9, 3
      %p148 = pnand %p146, %p147
      %p149 = pneg %p148
      // Predicated region
      $region9: #{transformer_model_forward.21} parent=5 // pred_check
        _
      $region10: #{transformer_model_forward.21} parent=5 // pred_check_branch
        %151 = sbr.rel (%p148) target = $region12
      $region11: #{transformer_model_forward.21} parent=5 // pred_region
        %s152 = ssub.s32 %s9, 1
        // Predicated region
        $region13: #{transformer_model_forward.21} parent=11 // pred_check
          %p153 = pneg %p56
        $region14: #{transformer_model_forward.21} parent=11 // pred_check_branch
          %155 = sbr.rel (%p153) target = $region16
        $region15: #{transformer_model_forward.21} parent=11 // pred_region
          %s156 = smul.u32 2, %s19
          %p157 = scmp.lt.s32.totalorder %s156, 1
          %s158 = scalar_select %p157, %s156, 1
          %p159 = scmp.lt.s32.totalorder %s21, 0
          %s160 = scalar_select %p159, %s21, 0
          %s161 = sadd.s32 %s160, %s158
          %s162 = smul.addr %s161, 4
          %s163 = scalar_lea.vmem %s0, %s162
          %s164 = smul.u32 2, %s19
        $region16: #{transformer_model_forward.21} parent=11 // pred_fallthru
          _
      $region12: #{transformer_model_forward.21} parent=5 // pred_fallthru
        _
      %p165 = scmp.lt.s32.totalorder %s9, 2
      // Predicated region
      $region17: #{transformer_model_forward.21} parent=5 // pred_check
        %p166 = pneg %p165
      $region18: #{transformer_model_forward.21} parent=5 // pred_check_branch
        %168 = sbr.rel (%p166) target = $region20
      $region19: #{transformer_model_forward.21} parent=5 // pred_region
        // Predicated region
        $region21: #{transformer_model_forward.21} parent=19 // pred_check
          %p169 = pneg %p78
        $region22: #{transformer_model_forward.21} parent=19 // pred_check_branch
          %171 = sbr.rel (%p169) target = $region24
        $region23: #{transformer_model_forward.21} parent=19 // pred_region
          %s172 = sand.u32 %s68, 1
          %s173 = sand.u32 %s68, 1
          %s174 = smul.addr %s173, 32
          %s175 = scalar_lea.vmem [#allocation3], %s174
          %s176 = smul.u32 4, %s18
          %s177 = smul.u32 2, %s17
          %s178 = smul.addr %s176, 4
          %s179 = sadd.s32 %s177, %s178
          %s180 = smul.addr %s179, 4
          %s181 = scalar_lea.vmem %s1, %s180
          // Predicated region
          $region25: #{transformer_model_forward.21} parent=23 // pred_check
            _
          $region26: #{transformer_model_forward.21} parent=23 // pred_check_branch
            %183 = sbr.rel (0) target = $region28
          $region27: #{transformer_model_forward.21} parent=23 // pred_region
            // Predicated region
            $region29: #{transformer_model_forward.21} parent=27 // pred_check
              _
            $region30: #{transformer_model_forward.21} parent=27 // pred_check_branch
              %185 = sbr.rel (0) target = $region32
            $region31: #{transformer_model_forward.21} parent=27 // pred_region
              // Predicated region
              $region44: #{transformer_model_forward.21} parent=31 // pred_check
                _
              $region45: #{transformer_model_forward.21} parent=31 // pred_check_branch
                %206 = sbr.rel (0) target = $region47
              $region46: #{transformer_model_forward.21} parent=31 // pred_region
                loop: start=0, step=1, limit=1
                $region48: #{transformer_model_forward.21} parent=46 // loop_pre_header
                  _
                $region49: #{transformer_model_forward.21} parent=46 // loop_header
                  %s208 = sphi 0, %s212
                  %p209 = scmp.ge.s32.totalorder %s208, 1
                  %s213 = sphi %s181, %s181
                  %s214 = sphi %s175, %s175
                $region50: #{transformer_model_forward.21} parent=46 // loop_header_branch
                  %211 = sbr.rel (%p209) target = $region54
                $region51: #{transformer_model_forward.21} parent=46 // loop_body
                  %v215 = vld [vmem:[%s213] sm:$0xff]
                  %216 = vst [vmem:[%s214] sm:$0xff] %v215
                  %v217 = vld [vmem:[%s213 + $0x10] sm:$0xff]
                  %218 = vst [vmem:[%s214 + $0x8] sm:$0xff] %v217
                  %v219 = vld [vmem:[%s213 + $0x20] sm:$0xff]
                  %220 = vst [vmem:[%s214 + $0x10] sm:$0xff] %v219
                  %v221 = vld [vmem:[%s213 + $0x30] sm:$0xff]
                  %222 = vst [vmem:[%s214 + $0x18] sm:$0xff] %v221
                $region52: #{transformer_model_forward.21} parent=46 // loop_footer
                  %s212 = sadd.s32 1, %s208
                $region53: #{transformer_model_forward.21} parent=46 // loop_footer_branch
                  %207 = sbr.rel target = $region49
                $region54: #{transformer_model_forward.21} parent=46 // loop_exit
                  _
              $region47: #{transformer_model_forward.21} parent=31 // pred_fallthru
                _
              // Predicated region
              $region55: #{transformer_model_forward.21} parent=31 // pred_check
                _
              $region56: #{transformer_model_forward.21} parent=31 // pred_check_branch
                %224 = sbr.rel target = $region58
              $region57: #{transformer_model_forward.21} parent=31 // pred_region
                _
              $region58: #{transformer_model_forward.21} parent=31 // pred_fallthru
                _
            $region32: #{transformer_model_forward.21} parent=27 // pred_fallthru
              _
            // Predicated region
            $region33: #{transformer_model_forward.21} parent=27 // pred_check
              _
            $region34: #{transformer_model_forward.21} parent=27 // pred_check_branch
              %187 = sbr.rel target = $region36
            $region35: #{transformer_model_forward.21} parent=27 // pred_region
              loop: start=0, step=1, limit=1
              $region37: #{transformer_model_forward.21} parent=35 // loop_pre_header
                _
              $region38: #{transformer_model_forward.21} parent=35 // loop_header
                %s190 = sphi 0, %s194
                %p191 = scmp.ge.s32.totalorder %s190, 1
                %s195 = sphi %s181, %s181
                %s196 = sphi %s175, %s175
              $region39: #{transformer_model_forward.21} parent=35 // loop_header_branch
                %193 = sbr.rel (%p191) target = $region43
              $region40: #{transformer_model_forward.21} parent=35 // loop_body
                %v197 = vld [vmem:[%s195] sm:$0xff]
                %198 = vst [vmem:[%s196] sm:$0xff] %v197
                %v199 = vld [vmem:[%s195 + $0x10] sm:$0xff]
                %200 = vst [vmem:[%s196 + $0x8] sm:$0xff] %v199
                %v201 = vld [vmem:[%s195 + $0x20] sm:$0xff]
                %202 = vst [vmem:[%s196 + $0x10] sm:$0xff] %v201
                %v203 = vld [vmem:[%s195 + $0x30] sm:$0xff]
                %204 = vst [vmem:[%s196 + $0x18] sm:$0xff] %v203
              $region41: #{transformer_model_forward.21} parent=35 // loop_footer
                %s194 = sadd.s32 1, %s190
              $region42: #{transformer_model_forward.21} parent=35 // loop_footer_branch
                %189 = sbr.rel target = $region38
              $region43: #{transformer_model_forward.21} parent=35 // loop_exit
                _
            $region36: #{transformer_model_forward.21} parent=27 // pred_fallthru
              _
          $region28: #{transformer_model_forward.21} parent=23 // pred_fallthru
            _
          %225 = vnop
        $region24: #{transformer_model_forward.21} parent=19 // pred_fallthru
          _
        // Predicated region
        $region59: #{transformer_model_forward.21} parent=19 // pred_check
          %p226 = pneg %p104
        $region60: #{transformer_model_forward.21} parent=19 // pred_check_branch
          %228 = sbr.rel (%p226) target = $region62
        $region61: #{transformer_model_forward.21} parent=19 // pred_region
          %s229 = smul.u32 2, %s17
          %p230 = scmp.lt.s32.totalorder %s229, 3
          %s231 = scalar_select %p230, %s229, 3
          %s232 = scalar_lea.vmem %s2, %s231
          %s233 = smul.u32 2, %s17
        $region62: #{transformer_model_forward.21} parent=19 // pred_fallthru
          _
      $region20: #{transformer_model_forward.21} parent=5 // pred_fallthru
        _
      %p234 = scmp.le.s32.totalorder 1, %s9
      %p235 = scmp.lt.s32.totalorder %s9, 3
      %p236 = pnand %p234, %p235
      %p237 = pneg %p236
      // Predicated region
      $region63: #{transformer_model_forward.21} parent=5 // pred_check
        _
      $region64: #{transformer_model_forward.21} parent=5 // pred_check_branch
        %239 = sbr.rel (%p236) target = $region66
      $region65: #{transformer_model_forward.21} parent=5 // pred_region
        %s240 = ssub.s32 %s9, 1
        %s241 = sand.u32 %s71, 1
        %s242 = sand.u32 %s71, 1
        %s243 = smul.addr %s242, 32
        %s244 = scalar_lea.vmem [#allocation3], %s243
        // Predicated region
        $region67: #{transformer_model_forward.21} parent=65 // pred_check
          %p245 = pneg %p84
        $region68: #{transformer_model_forward.21} parent=65 // pred_check_branch
          %247 = sbr.rel (%p245) target = $region70
        $region69: #{transformer_model_forward.21} parent=65 // pred_region
          _
        $region70: #{transformer_model_forward.21} parent=65 // pred_fallthru
          _
        %s248 = smul.u32 2, %s19
        %p249 = scmp.lt.s32.totalorder %s248, 1
        %s250 = scalar_select %p249, %s248, 1
        %p251 = scmp.lt.s32.totalorder %s21, 0
        %s252 = scalar_select %p251, %s21, 0
        %s253 = sadd.s32 %s252, %s250
        %s254 = smul.addr %s253, 4
        %s255 = scalar_lea.vmem %s0, %s254
        %p256 = pneg %p56
        %p257 = pneg %p53
        %s258 = sand.u32 %s71, 1
        %s259 = sand.u32 %s71, 1
        %s260 = smul.addr %s259, 32
        %s261 = scalar_lea.vmem [#allocation3], %s260
        %p262 = pneg %p84
        %p263 = pneg %p81
        %s264 = smul.u32 2, %s20
        %p265 = scmp.lt.s32.totalorder %s264, 3
        %s266 = scalar_select %p265, %s264, 3
        %s267 = scalar_lea.vmem %s2, %s266
        %p268 = pneg %p110
        %p269 = pneg %p107
        %p270 = pneg %p138
        %p271 = pneg %p135
        %s272 = sand.u32 %s125, 1
        %s273 = sand.u32 %s125, 1
        %s274 = smul.addr %s273, 32
        %s275 = scalar_lea.vmem [#allocation4], %s274
        %s276 = smul.u32 2, %s19
        %p277 = scmp.lt.s32.totalorder %s276, 1
        %s278 = scalar_select %p277, %s276, 1
        %p279 = scmp.lt.s32.totalorder %s21, 0
        %s280 = scalar_select %p279, %s21, 0
        %s281 = sadd.s32 %s280, %s278
        %s282 = smul.addr %s281, 4
        %s283 = scalar_lea.vmem %s0, %s282
        %s284 = smul.u32 2, %s19
        %s285 = smul.u32 4, %s21
        %s286 = smul.u32 2, %s20
        %s287 = smul.u32 2, %s20
        %p288 = scmp.lt.s32.totalorder %s287, 3
        %s289 = scalar_select %p288, %s287, 3
        %s290 = scalar_lea.vmem %s2, %s289
        %s291 = smul.u32 2, %s20
        %s292 = smul.u32 2, %s19
        %s293 = smul.u32 2, %s20
        %p295 = scmp.eq.s32.totalorder %s21, 0
        // Predicated region
        $region71: #{transformer_model_forward.21} parent=65 // pred_check
          %p296 = pneg %p295
        $region72: #{transformer_model_forward.21} parent=65 // pred_check_branch
          %298 = sbr.rel (%p296) target = $region74
        $region73: #{transformer_model_forward.21} parent=65 // pred_region
          %v299 = vld [vmem:[%s290] sm:$0x3]
          %v301 = vlaneseq
          %v302 = vshrl.u32 %v301, 7
          %v303 = vsub.s32 0, %v302
          %v304 = vrot.slane %v299, %v303
          %v305 = vlaneseq
          %v306 = vshrl.u32 %v305, 7
          %v307 = vsub.s32 1, %v306
          %v308 = vrot.slane %v299, %v307
          %311 = vst [vmem:[#allocation2] sm:$0xff] %v304
          %312 = vst [vmem:[#allocation2 + $0x8] sm:$0xff] %v308
          %313 = vst [vmem:[#allocation2 + $0x10] sm:$0xff] %v304
          %314 = vst [vmem:[#allocation2 + $0x18] sm:$0xff] %v308
        $region74: #{transformer_model_forward.21} parent=65 // pred_fallthru
          _
        %v315 = vld [vmem:[#allocation2] sm:$0xff]
        %v316 = vld [vmem:[#allocation2 + $0x8] sm:$0xff]
        %v317 = vld [vmem:[#allocation2 + $0x10] sm:$0xff]
        %v318 = vld [vmem:[#allocation2 + $0x18] sm:$0xff]
        %v319 = vld [vmem:[%s283] sm:$0xf]
        %v320 = vld [vmem:[%s283 + $0x4] sm:$0xf]
        %v321 = vld [vmem:[%s244] sm:$0xff]
        %v322 = vld [vmem:[%s244 + $0x8] sm:$0xff]
        %v323 = vld [vmem:[%s244 + $0x10] sm:$0xff]
        %v324 = vld [vmem:[%s244 + $0x18] sm:$0xff]
        %v327 = vunpack.c.l.b16 %v319
        %v328 = vunpack.c.l.b16 %v320
        %v329 = vpack.c.b16 %v328, %v327
        %v334 = vunpack.c.l.b16 %v321
        %v335 = vunpack.c.h.b16 %v321
        %v336 = vunpack.c.l.b16 %v322
        %v337 = vunpack.c.h.b16 %v322
        %v338 = vunpack.c.l.b16 %v323
        %v339 = vunpack.c.h.b16 %v323
        %v340 = vunpack.c.l.b16 %v324
        %v341 = vunpack.c.h.b16 %v324
        %v342 = vpack.c.b16 %v336, %v334
        %v343 = vpack.c.b16 %v337, %v335
        %v344 = vpack.c.b16 %v340, %v338
        %v345 = vpack.c.b16 %v341, %v339
        %vm350 = vcmask 261120
        %v352 = vsel %vm350, %v329, 0
        %354 = vmatprep.subr.bf16.mxu0 %v343
        %355 = vmatpush1.bf16.msra.mxu0 %v342
        %356 = vmatprep.subr.bf16.mxu0 %v345
        %357 = vmatpush1.bf16.msra.mxu0 %v344
        %358 = vmatprep.subr.bf16.mxu0 0
        %359 = vmatpush1.bf16.msra.mxu0 0
        %360 = vmatprep.subr.bf16.mxu0 0
        %361 = vmatpush1.bf16.msra.mxu0 0
        %362 = vmatprep.subr.bf16.mxu0 0
        %363 = vmatpush1.bf16.msra.mxu0 0
        %364 = vmatprep.subr.bf16.mxu0 0
        %365 = vmatpush1.bf16.msra.mxu0 0
        %366 = vmatprep.subr.bf16.mxu0 0
        %367 = vmatpush1.bf16.msra.mxu0 0
        %368 = vmatprep.subr.bf16.mxu0 0
        %369 = vmatpush1.bf16.msra.mxu0 0
        %370 = vmatprep.subr.bf16.mxu0 0
        %371 = vmatpush1.bf16.msra.mxu0 0
        %372 = vmatprep.subr.bf16.mxu0 0
        %373 = vmatpush1.bf16.msra.mxu0 0
        %374 = vmatprep.subr.bf16.mxu0 0
        %375 = vmatpush1.bf16.msra.mxu0 0
        %376 = vmatprep.subr.bf16.mxu0 0
        %377 = vmatpush1.bf16.msra.mxu0 0
        %378 = vmatprep.subr.bf16.mxu0 0
        %379 = vmatpush1.bf16.msra.mxu0 0
        %380 = vmatprep.subr.bf16.mxu0 0
        %381 = vmatpush1.bf16.msra.mxu0 0
        %382 = vmatprep.subr.bf16.mxu0 0
        %383 = vmatpush1.bf16.msra.mxu0 0
        %384 = vmatprep.subr.bf16.mxu0 0
        %385 = vmatpush1.bf16.msra.mxu0 0
        %386 = vmatprep.mubr.bf16.mxu0 0
        %387 = vmatmul.mubr.bf16.gmra.mrb[0].mxu0 %v352
        %v388 = vpop.f32.mrb[0].mxu0
        %v389 = vadd.f32 0.0, %v388
        %v390 = vpop.f32.mrb[0].mxu0
        %v391 = vadd.f32 0.0, %v390
        %v392 = vpop.f32.mrb[0].mxu0
        %v393 = vadd.f32 0.0, %v392
        %v394 = vpop.f32.mrb[0].mxu0
        %v395 = vadd.f32 0.0, %v394
        %396 = vdwg.mxu0
        %v397 = vadd.f32 %v315, %v389
        %v398 = vadd.f32 %v316, %v391
        %v399 = vadd.f32 %v317, %v393
        %v400 = vadd.f32 %v318, %v395
        %401 = vst [vmem:[#allocation2] sm:$0xff] %v397
        %402 = vst [vmem:[#allocation2 + $0x8] sm:$0xff] %v398
        %403 = vst [vmem:[#allocation2 + $0x10] sm:$0xff] %v399
        %404 = vst [vmem:[#allocation2 + $0x18] sm:$0xff] %v400
        // Predicated region
        $region75: #{transformer_model_forward.21} parent=65 // pred_check
          %p405 = pneg %p295
        $region76: #{transformer_model_forward.21} parent=65 // pred_check_branch
          %407 = sbr.rel (%p405) target = $region78
        $region77: #{transformer_model_forward.21} parent=65 // pred_region
          %v408 = vld [vmem:[#allocation2] sm:$0xff]
          %v409 = vld [vmem:[#allocation2 + $0x8] sm:$0xff]
          %v410 = vld [vmem:[#allocation2 + $0x10] sm:$0xff]
          %v411 = vld [vmem:[#allocation2 + $0x18] sm:$0xff]
          %412 = vst [vmem:[%s275] sm:$0xff] %v408
          %413 = vst [vmem:[%s275 + $0x8] sm:$0xff] %v409
          %414 = vst [vmem:[%s275 + $0x10] sm:$0xff] %v410
          %415 = vst [vmem:[%s275 + $0x18] sm:$0xff] %v411
        $region78: #{transformer_model_forward.21} parent=65 // pred_fallthru
          _
        %s416 = sand.u32 %s125, 1
        %s417 = sand.u32 %s125, 1
        %s418 = smul.addr %s417, 32
        %s419 = scalar_lea.vmem [#allocation4], %s418
        // Predicated region
        $region79: #{transformer_model_forward.21} parent=65 // pred_check
          %p420 = pneg %p135
        $region80: #{transformer_model_forward.21} parent=65 // pred_check_branch
          %422 = sbr.rel (%p420) target = $region82
        $region81: #{transformer_model_forward.21} parent=65 // pred_region
          %s423 = smul.u32 2, %s19
          %s424 = smul.u32 2, %s20
          %s425 = smul.addr %s423, 4
          %s426 = sadd.s32 %s424, %s425
          %s427 = smul.addr %s426, 8
          %s428 = scalar_lea.vmem %s3, %s427
          // Predicated region
          $region83: #{transformer_model_forward.21} parent=81 // pred_check
            _
          $region84: #{transformer_model_forward.21} parent=81 // pred_check_branch
            %430 = sbr.rel (0) target = $region86
          $region85: #{transformer_model_forward.21} parent=81 // pred_region
            // Predicated region
            $region87: #{transformer_model_forward.21} parent=85 // pred_check
              _
            $region88: #{transformer_model_forward.21} parent=85 // pred_check_branch
              %432 = sbr.rel (0) target = $region90
            $region89: #{transformer_model_forward.21} parent=85 // pred_region
              loop: start=0, step=1, limit=1
              $region91: #{transformer_model_forward.21} parent=89 // loop_pre_header
                _
              $region92: #{transformer_model_forward.21} parent=89 // loop_header
                %s434 = sphi 0, %s438
                %p435 = scmp.ge.s32.totalorder %s434, 1
                %s439 = sphi %s419, %s419
                %s440 = sphi %s428, %s428
              $region93: #{transformer_model_forward.21} parent=89 // loop_header_branch
                %437 = sbr.rel (%p435) target = $region97
              $region94: #{transformer_model_forward.21} parent=89 // loop_body
                %v441 = vld [vmem:[%s439] sm:$0xff]
                %442 = vst [vmem:[%s440] sm:$0xff] %v441
                %v443 = vld [vmem:[%s439 + $0x8] sm:$0xff]
                %444 = vst [vmem:[%s440 + $0x8] sm:$0xff] %v443
                %v445 = vld [vmem:[%s439 + $0x10] sm:$0xff]
                %446 = vst [vmem:[%s440 + $0x20] sm:$0xff] %v445
                %v447 = vld [vmem:[%s439 + $0x18] sm:$0xff]
                %448 = vst [vmem:[%s440 + $0x28] sm:$0xff] %v447
              $region95: #{transformer_model_forward.21} parent=89 // loop_footer
                %s438 = sadd.s32 1, %s434
              $region96: #{transformer_model_forward.21} parent=89 // loop_footer_branch
                %433 = sbr.rel target = $region92
              $region97: #{transformer_model_forward.21} parent=89 // loop_exit
                _
            $region90: #{transformer_model_forward.21} parent=85 // pred_fallthru
              _
            // Predicated region
            $region98: #{transformer_model_forward.21} parent=85 // pred_check
              _
            $region99: #{transformer_model_forward.21} parent=85 // pred_check_branch
              %450 = sbr.rel target = $region101
            $region100: #{transformer_model_forward.21} parent=85 // pred_region
              _
            $region101: #{transformer_model_forward.21} parent=85 // pred_fallthru
              _
          $region86: #{transformer_model_forward.21} parent=81 // pred_fallthru
            _
          %451 = vnop
        $region82: #{transformer_model_forward.21} parent=65 // pred_fallthru
          _
      $region66: #{transformer_model_forward.21} parent=5 // pred_fallthru
        _
      %p452 = scmp.le.s32.totalorder 2, %s9
      // Predicated region
      $region102: #{transformer_model_forward.21} parent=5 // pred_check
        %p453 = pneg %p452
      $region103: #{transformer_model_forward.21} parent=5 // pred_check_branch
        %455 = sbr.rel (%p453) target = $region105
      $region104: #{transformer_model_forward.21} parent=5 // pred_region
        %s456 = ssub.s32 %s9, 2
        // Predicated region
        $region106: #{transformer_model_forward.21} parent=104 // pred_check
          %p457 = pneg %p141
        $region107: #{transformer_model_forward.21} parent=104 // pred_check_branch
          %459 = sbr.rel (%p457) target = $region109
        $region108: #{transformer_model_forward.21} parent=104 // pred_region
          %s460 = sand.u32 %s126, 1
          %s461 = sand.u32 %s126, 1
          %s462 = smul.addr %s461, 32
          %s463 = scalar_lea.vmem [#allocation4], %s462
        $region109: #{transformer_model_forward.21} parent=104 // pred_fallthru
          _
      $region105: #{transformer_model_forward.21} parent=5 // pred_fallthru
        _
    $region6: #{transformer_model_forward.21} parent=1 // loop_footer
      %s13 = sadd.s32 1, %s9
    $region7: #{transformer_model_forward.21} parent=1 // loop_footer_branch
      %8 = sbr.rel target = $region3
    $region8: #{transformer_model_forward.21} parent=1 // loop_exit
      _

</llo_original>
